<compile_context>
chip_gen: v5e
topology: v5e:2x2
jax: 0.10.0
libtpu: 0.0.40
codegen_flags: <defaults>
</compile_context>

<pallas_src>
import jax
import jax.numpy as jnp
from jax.experimental import pallas as pl
from jax.experimental.pallas import tpu as pltpu

_COL_CANDIDATES = (2048, 1024, 512, 256, 128)   # lane-dense last dims
_TARGET_BLOCK_BYTES = 4 * 1024 * 1024           # ~4 MiB/block hits HBM roofline
_MIN_GRID_STEPS = 8                             # >= 4 steps per TC on v7x
_SMALL_INPUT_ELEMS = 1024 * 1024                # below this, pure-JAX path wins
_VMEM_HEADROOM_BYTES = 4 * 1024 * 1024          # Mosaic internal scratch slack

# v7x-only knob: skip the f32 upcast for bf16/f16 inputs (halves vreg/EUP work).
# Default off; enable only after validating accuracy + measuring on v7x.
_NATIVE_LOW_PRECISION = False


def _silu_kernel(x_ref, o_ref):
    x = x_ref[...]
    if _NATIVE_LOW_PRECISION and x.dtype in (jnp.bfloat16, jnp.float16):
        # TODO(synk): measure native low-precision SiLU on v7x before enabling.
        o_ref[...] = (x * jax.nn.sigmoid(x)).astype(o_ref.dtype)
    else:
        # Compute in f32 (no-op cast for f32 inputs); mem-bound, so the upcast
        # and the EUP exp/reciprocal are hidden under the HBM DMA.
        xf = x.astype(jnp.float32)
        denom = 1.0 + jnp.exp(-xf)                       # exp -> EUP slot
        inv = pl.reciprocal(denom, approx=False)         # reciprocal -> EUP slot
        o_ref[...] = (xf * inv).astype(o_ref.dtype)


def silu_pallas(x: jax.Array) -> jax.Array:
    """SiLU / swish: x * sigmoid(x), elementwise, any shape/dtype."""
    orig_shape = x.shape
    total = x.size
    if total == 0:
        return x
    if total < _SMALL_INPUT_ELEMS:
        # Launch + wrapper overhead dominates for small arrays; let XLA fuse it.
        return x * jax.nn.sigmoid(x)

    # Pick the widest lane-dense column count that divides the flat size so no
    # padding (and therefore no extra HBM passes) is ever needed.
    cols = 0
    for c in _COL_CANDIDATES:
        if total % c == 0:
            cols = c
            break
    if cols == 0:
        # Ragged total (not a multiple of 128): pad + slice would add two full
        # HBM read/write passes to a bandwidth-bound op. XLA's fused kernel is
        # strictly cheaper here.
        return x * jax.nn.sigmoid(x)

    itemsize = jnp.dtype(x.dtype).itemsize
    # Sublane multiple: 8 for f32, 16 for bf16/f16, 32 for int8/fp8.
    sub = max(8, 8 * (4 // max(1, itemsize)))

    rows = total // cols
    x2 = x.reshape(rows, cols)   # contiguous reshape: free bitcast, no copy

    # ~_TARGET_BLOCK_BYTES per block, rounded down to the sublane multiple.
    tile_r = max(sub, (_TARGET_BLOCK_BYTES // (cols * itemsize)) // sub * sub)
    # Keep the grid deep enough to pipeline: >= _MIN_GRID_STEPS steps when rows
    # allow, so each TensorCore (2 on v7x) still gets several steps after the
    # parallel split. Small blocks are fine: 1-4 MiB already saturates HBM.
    cap = (rows // _MIN_GRID_STEPS) // sub * sub
    if cap >= sub:
        tile_r = min(tile_r, cap)
    tile_r = min(tile_r, rows)

    grid = (pl.cdiv(rows, tile_r),)

    # Scoped VMEM: double-buffered input + double-buffered output + headroom.
    block_bytes = tile_r * cols * itemsize
    vmem_limit = max(4 * block_bytes + _VMEM_HEADROOM_BYTES, 8 * 1024 * 1024)

    out = pl.pallas_call(
        _silu_kernel,
        out_shape=jax.ShapeDtypeStruct((rows, cols), x.dtype),
        grid_spec=pltpu.PrefetchScalarGridSpec(
            num_scalar_prefetch=0,
            grid=grid,
            in_specs=[pl.BlockSpec((tile_r, cols), lambda i: (i, 0))],
            out_specs=pl.BlockSpec((tile_r, cols), lambda i: (i, 0)),
        ),
        compiler_params=pltpu.CompilerParams(
            dimension_semantics=("parallel",),
            vmem_limit_bytes=int(vmem_limit),
        ),
        cost_estimate=pl.CostEstimate(
            flops=4 * total,
            transcendentals=total,
            bytes_accessed=2 * total * itemsize,
        ),
    )(x2)

    return out.reshape(orig_shape)


if __name__ == "__main__":
    key = jax.random.PRNGKey(0)
    k0, k1, k2, k3 = jax.random.split(key, 4)

    def _check(x):
        y = jax.block_until_ready(silu_pallas(x))
        ref = x * jax.nn.sigmoid(x)
        assert y.shape == x.shape and y.dtype == x.dtype
        assert jnp.allclose(y, ref, atol=1e-5, rtol=1e-5)

    # 1) Small NCHW-style input consistent with the module's forward
    #    (exercises the small-input fast path).
    _check(jax.random.normal(k0, (2, 4, 16, 16), dtype=jnp.float32))

    # 2) 1M-element input: cols=2048 path, >= 8 pipelined grid steps.
    _check(jax.random.normal(k1, (2, 4, 256, 512), dtype=jnp.float32))

    # 3) Total divisible by 1024 but not 2048: adaptive-cols path with a
    #    masked partial last row-block (no padding anywhere).
    _check(jax.random.normal(k2, (5, 205, 32, 32), dtype=jnp.float32))

    # 4) Ragged total (not a multiple of 128) above the cutoff: XLA fallback.
    _check(jax.random.normal(k3, (1027, 1027), dtype=jnp.float32))

    print("KERNEL_OK")
</pallas_src>

<mosaic_0001>
module attributes {stable_mosaic.version = 11 : i64} {
  func.func @_silu_kernel(%arg0: i32, %arg1: memref<64x2048xf32, #tpu.memory_space<vmem>>, %arg2: memref<64x2048xf32, #tpu.memory_space<vmem>>) attributes {dimension_semantics = [#tpu.dimension_semantics<parallel>], iteration_bounds = array<i64: 8>, scalar_prefetch = 0 : i64, scratch_operands = 0 : i64, tpu.core_type = #tpu.core_type<tc>, window_params = [{transform_indices = @transform_0, window_bounds = array<i64: 64, 2048>}, {transform_indices = @transform_1, window_bounds = array<i64: 64, 2048>}]} {
    %c0 = arith.constant 0 : index
    %c0_0 = arith.constant 0 : index
    %0 = vector.load %arg1[%c0, %c0_0] : memref<64x2048xf32, #tpu.memory_space<vmem>>, vector<64x2048xf32>
    %cst = arith.constant 0.000000e+00 : f32
    %1 = vector.broadcast %cst : f32 to vector<64x2048xf32>
    %2 = arith.subf %1, %0 : vector<64x2048xf32>
    %3 = math.exp %2 : vector<64x2048xf32>
    %cst_1 = arith.constant 1.000000e+00 : f32
    %4 = vector.broadcast %cst_1 : f32 to vector<64x2048xf32>
    %5 = arith.addf %4, %3 : vector<64x2048xf32>
    %6 = tpu.reciprocal %5 : vector<64x2048xf32> -> vector<64x2048xf32>
    %7 = arith.mulf %0, %6 : vector<64x2048xf32>
    %c0_2 = arith.constant 0 : index
    %c0_3 = arith.constant 0 : index
    %8 = vector.load %arg2[%c0_2, %c0_3] : memref<64x2048xf32, #tpu.memory_space<vmem>>, vector<64x2048xf32>
    tpu.vector_store %arg2[%c0_2, %c0_3], %7 {strides = array<i32>} : memref<64x2048xf32, #tpu.memory_space<vmem>>, vector<64x2048xf32>,
    return
  }
  func.func @transform_0(%arg0: i32) -> (i32, i32) {
    %c0_i32 = arith.constant 0 : i32
    %c0_i32_0 = arith.constant 0 : i32
    return %arg0, %c0_i32 : i32, i32
  }
  func.func @transform_1(%arg0: i32) -> (i32, i32) {
    %c0_i32 = arith.constant 0 : i32
    %c0_i32_0 = arith.constant 0 : i32
    return %arg0, %c0_i32 : i32, i32
  }
}

</mosaic_0001>

<llo_original>
// kernel: tpu_custom_call.1
$region0: #{tpu_custom_call.1}
  #allocation0 [shape = 'u32[]', space=smem, size = 0x4, offset = 0x4, fixed_abs, tag = 'smem constant byte address 0x4 - core index']
  #allocation1 [shape = 'u32[72,128]{1,0:T(1,128)}', space=vmem, size = 0x9000, scoped, tag = 'internal scratch']
  %s0 = inlined_call_operand.hbm [shape: f32[512,2048], index: 0, kind: input, shape index: {}]
  %s1 = inlined_call_operand.hbm [shape: f32[512,2048], index: 1, kind: output, shape index: {}]
  %s2 = sld [smem:[#allocation0]]
  $region41: #{tpu_custom_call.1} parent=0
    _
  %s4 = ssub.s32 1, %s2
  %s5 = scalar_select 0, %s4, %s2
  $region1: #{tpu_custom_call.1} parent=0
    #allocation2 [shape = 'u8[1048576]{0}', space=vmem, size = 0x100000, scoped, tag = 'input window, operand 0']
    #allocation3 [shape = 's32[2]{0}', space=sflag, size = 0x8, scoped, tag = 'scoped memory for tpu_custom_call.1']
    #allocation4 [shape = 's32[2]{0}', space=sflag, size = 0x8, scoped, tag = 'scoped memory for tpu_custom_call.1']
    #allocation5 [shape = 'u8[1048576]{0}', space=vmem, size = 0x100000, scoped, tag = 'output window, operand 0']
    %6 = vsyncpa [#allocation3], 0
    %s7 = scalar_lea.sflag [#allocation3], 1
    %8 = vsyncpa %s7, 0
    %9 = vsyncpa [#allocation4], 0
    %s10 = scalar_lea.sflag [#allocation4], 1
    %11 = vsyncpa %s10, 0
    loop: start=0, step=1, limit=10
    $region2: #{tpu_custom_call.1} parent=1 // loop_pre_header
      _
    $region3: #{tpu_custom_call.1} parent=1 // loop_header
      %s13 = sphi 0, %s17
      %p14 = scmp.ge.s32.totalorder %s13, 10
      %s23 = sphi 0, %s25
      %s26 = sphi 0, %s23
      %s27 = sphi 0, %s26
      %s43 = sphi 0, %s27
      %s49 = sphi 0, %s51
      %s52 = sphi 0, %s49
      %s53 = sphi 0, %s52
      %s69 = sphi 0, %s53
    $region4: #{tpu_custom_call.1} parent=1 // loop_header_branch
      %16 = sbr.rel (%p14) target = $region8
    $region5: #{tpu_custom_call.1} parent=1 // loop_body
      %s18 = ssub.s32 %s13, 1
      %s19 = ssub.s32 %s13, 2
      %s20 = sadd.s32 %s13, 1
      %s21 = ssub.s32 %s13, %s20
      %p22 = scmp.eq.s32.totalorder %s21, 0
      %s24 = sadd.s32 %s23, 1
      %s25 = scalar_select %p22, %s23, %s24
      %p28 = pneg %p22
      %p29 = scmp.eq.s32.totalorder %s13, 7
      %p30 = por %p28, %p29
      %p31 = scmp.ne.s32.totalorder %s23, %s26
      %p32 = scmp.eq.s32.totalorder %s13, 0
      %p33 = por %p31, %p32
      %p34 = scmp.ne.s32.totalorder %s23, %s26
      %p35 = scmp.eq.s32.totalorder %s18, 7
      %p36 = por %p34, %p35
      %p37 = scmp.ne.s32.totalorder %s26, %s27
      %p38 = scmp.eq.s32.totalorder %s18, 0
      %p39 = por %p37, %p38
      %p40 = scmp.ne.s32.totalorder %s26, %s27
      %p41 = scmp.eq.s32.totalorder %s19, 7
      %p42 = por %p40, %p41
      %p44 = scmp.ne.s32.totalorder %s27, %s43
      %p45 = scmp.eq.s32.totalorder %s19, 0
      %p46 = por %p44, %p45
      %s47 = ssub.s32 %s13, %s20
      %p48 = scmp.eq.s32.totalorder %s47, 0
      %s50 = sadd.s32 %s49, 1
      %s51 = scalar_select %p48, %s49, %s50
      %p54 = pneg %p48
      %p55 = scmp.eq.s32.totalorder %s13, 7
      %p56 = por %p54, %p55
      %p57 = scmp.ne.s32.totalorder %s49, %s52
      %p58 = scmp.eq.s32.totalorder %s13, 0
      %p59 = por %p57, %p58
      %p60 = scmp.ne.s32.totalorder %s49, %s52
      %p61 = scmp.eq.s32.totalorder %s18, 7
      %p62 = por %p60, %p61
      %p63 = scmp.ne.s32.totalorder %s52, %s53
      %p64 = scmp.eq.s32.totalorder %s18, 0
      %p65 = por %p63, %p64
      %p66 = scmp.ne.s32.totalorder %s52, %s53
      %p67 = scmp.eq.s32.totalorder %s19, 7
      %p68 = por %p66, %p67
      %p70 = scmp.ne.s32.totalorder %s53, %s69
      %p71 = scmp.eq.s32.totalorder %s19, 0
      %p72 = por %p70, %p71
      %p73 = scmp.le.s32.totalorder 1, %s13
      %p74 = scmp.lt.s32.totalorder %s13, 9
      %p75 = pnand %p73, %p74
      %p76 = pneg %p75
      // Predicated region
      $region9: #{tpu_custom_call.1} parent=5 // pred_check
        _
      $region10: #{tpu_custom_call.1} parent=5 // pred_check_branch
        %78 = sbr.rel (%p75) target = $region12
      $region11: #{tpu_custom_call.1} parent=5 // pred_region
        %s79 = ssub.s32 %s13, 1
      $region12: #{tpu_custom_call.1} parent=5 // pred_fallthru
        _
      %p80 = scmp.lt.s32.totalorder %s13, 8
      // Predicated region
      $region13: #{tpu_custom_call.1} parent=5 // pred_check
        %p81 = pneg %p80
      $region14: #{tpu_custom_call.1} parent=5 // pred_check_branch
        %83 = sbr.rel (%p81) target = $region16
      $region15: #{tpu_custom_call.1} parent=5 // pred_region
        // Predicated region
        $region17: #{tpu_custom_call.1} parent=15 // pred_check
          %p84 = pneg %p33
        $region18: #{tpu_custom_call.1} parent=15 // pred_check_branch
          %86 = sbr.rel (%p84) target = $region20
        $region19: #{tpu_custom_call.1} parent=15 // pred_region
          %s87 = sand.u32 %s23, 1
          %s88 = scalar_lea.sflag [#allocation3], %s87
          %s89 = sand.u32 %s23, 1
          %s90 = smul.addr %s89, 1024
          %s91 = scalar_lea.vmem [#allocation2], %s90
          %s92 = smul.u32 8, %s13
          %94 = vsyncadd %s88, 0
          %s95 = smul.addr %s92, 16
          %s96 = smul.addr %s95, 8
          %s97 = scalar_lea.hbm %s0, %s96
          %s98 = sshll.u32 %s97, 4
          %s99 = int_to_ptr.hbm [resolvable:$true] %s98
          %s100 = sshll.u32 %s91, 4
          %s101 = int_to_ptr.vmem [resolvable:$true] %s100
          %106 = dma.hbm_to_vmem [thread:$0]  %s99, 16384, %s101, %s88, 2048, 2048, 128
        $region20: #{tpu_custom_call.1} parent=15 // pred_fallthru
          _
      $region16: #{tpu_custom_call.1} parent=5 // pred_fallthru
        _
      %p107 = scmp.le.s32.totalorder 1, %s13
      %p108 = scmp.lt.s32.totalorder %s13, 9
      %p109 = pnand %p107, %p108
      %p110 = pneg %p109
      // Predicated region
      $region21: #{tpu_custom_call.1} parent=5 // pred_check
        _
      $region22: #{tpu_custom_call.1} parent=5 // pred_check_branch
        %112 = sbr.rel (%p109) target = $region24
      $region23: #{tpu_custom_call.1} parent=5 // pred_region
        %s113 = ssub.s32 %s13, 1
        %s114 = sand.u32 %s26, 1
        %s115 = scalar_lea.sflag [#allocation3], %s114
        %s116 = sand.u32 %s26, 1
        %s117 = smul.addr %s116, 1024
        %s118 = scalar_lea.vmem [#allocation2], %s117
        // Predicated region
        $region25: #{tpu_custom_call.1} parent=23 // pred_check
          %p119 = pneg %p39
        $region26: #{tpu_custom_call.1} parent=23 // pred_check_branch
          %121 = sbr.rel (%p119) target = $region28
        $region27: #{tpu_custom_call.1} parent=23 // pred_region
          %123 = dma.done %s115, 16384
        $region28: #{tpu_custom_call.1} parent=23 // pred_fallthru
          _
        %s124 = sand.u32 %s26, 1
        %s125 = scalar_lea.sflag [#allocation3], %s124
        %s126 = sand.u32 %s26, 1
        %s127 = smul.addr %s126, 1024
        %s128 = scalar_lea.vmem [#allocation2], %s127
        %p129 = pneg %p39
        %p130 = pneg %p36
        %p131 = pneg %p65
        %p132 = pneg %p62
        %s133 = sand.u32 %s52, 1
        %s134 = scalar_lea.sflag [#allocation4], %s133
        %s135 = sand.u32 %s52, 1
        %s136 = smul.addr %s135, 1024
        %s137 = scalar_lea.vmem [#allocation5], %s136
        %s138 = smul.u32 8, %s18
        %s139 = smul.u32 8, %s18
        %v140 = vld [vmem:[%s118] sm:$0xff]
        %v141 = vld [vmem:[%s118 + $0x8] sm:$0xff]
        %v142 = vld [vmem:[%s118 + $0x10] sm:$0xff]
        %v143 = vld [vmem:[%s118 + $0x18] sm:$0xff]
        %v144 = vld [vmem:[%s118 + $0x20] sm:$0xff]
        %v145 = vld [vmem:[%s118 + $0x28] sm:$0xff]
        %v146 = vld [vmem:[%s118 + $0x30] sm:$0xff]
        %v147 = vld [vmem:[%s118 + $0x38] sm:$0xff]
        %v148 = vld [vmem:[%s118 + $0x40] sm:$0xff]
        %v149 = vld [vmem:[%s118 + $0x48] sm:$0xff]
        %v150 = vld [vmem:[%s118 + $0x50] sm:$0xff]
        %v151 = vld [vmem:[%s118 + $0x58] sm:$0xff]
        %v152 = vld [vmem:[%s118 + $0x60] sm:$0xff]
        %v153 = vld [vmem:[%s118 + $0x68] sm:$0xff]
        %v154 = vld [vmem:[%s118 + $0x70] sm:$0xff]
        %v155 = vld [vmem:[%s118 + $0x78] sm:$0xff]
        %v156 = vld [vmem:[%s118 + $0x80] sm:$0xff]
        %v157 = vld [vmem:[%s118 + $0x88] sm:$0xff]
        %v158 = vld [vmem:[%s118 + $0x90] sm:$0xff]
        %v159 = vld [vmem:[%s118 + $0x98] sm:$0xff]
        %v160 = vld [vmem:[%s118 + $0xa0] sm:$0xff]
        %v161 = vld [vmem:[%s118 + $0xa8] sm:$0xff]
        %v162 = vld [vmem:[%s118 + $0xb0] sm:$0xff]
        %v163 = vld [vmem:[%s118 + $0xb8] sm:$0xff]
        %v164 = vld [vmem:[%s118 + $0xc0] sm:$0xff]
        %v165 = vld [vmem:[%s118 + $0xc8] sm:$0xff]
        %v166 = vld [vmem:[%s118 + $0xd0] sm:$0xff]
        %v167 = vld [vmem:[%s118 + $0xd8] sm:$0xff]
        %v168 = vld [vmem:[%s118 + $0xe0] sm:$0xff]
        %v169 = vld [vmem:[%s118 + $0xe8] sm:$0xff]
        %v170 = vld [vmem:[%s118 + $0xf0] sm:$0xff]
        %v171 = vld [vmem:[%s118 + $0xf8] sm:$0xff]
        %v172 = vld [vmem:[%s118 + $0x100] sm:$0xff]
        %v173 = vld [vmem:[%s118 + $0x108] sm:$0xff]
        %v174 = vld [vmem:[%s118 + $0x110] sm:$0xff]
        %v175 = vld [vmem:[%s118 + $0x118] sm:$0xff]
        %v176 = vld [vmem:[%s118 + $0x120] sm:$0xff]
        %v177 = vld [vmem:[%s118 + $0x128] sm:$0xff]
        %v178 = vld [vmem:[%s118 + $0x130] sm:$0xff]
        %v179 = vld [vmem:[%s118 + $0x138] sm:$0xff]
        %v180 = vld [vmem:[%s118 + $0x140] sm:$0xff]
        %v181 = vld [vmem:[%s118 + $0x148] sm:$0xff]
        %v182 = vld [vmem:[%s118 + $0x150] sm:$0xff]
        %v183 = vld [vmem:[%s118 + $0x158] sm:$0xff]
        %v184 = vld [vmem:[%s118 + $0x160] sm:$0xff]
        %v185 = vld [vmem:[%s118 + $0x168] sm:$0xff]
        %v186 = vld [vmem:[%s118 + $0x170] sm:$0xff]
        %v187 = vld [vmem:[%s118 + $0x178] sm:$0xff]
        %v188 = vld [vmem:[%s118 + $0x180] sm:$0xff]
        %v189 = vld [vmem:[%s118 + $0x188] sm:$0xff]
        %v190 = vld [vmem:[%s118 + $0x190] sm:$0xff]
        %v191 = vld [vmem:[%s118 + $0x198] sm:$0xff]
        %v192 = vld [vmem:[%s118 + $0x1a0] sm:$0xff]
        %v193 = vld [vmem:[%s118 + $0x1a8] sm:$0xff]
        %v194 = vld [vmem:[%s118 + $0x1b0] sm:$0xff]
        %v195 = vld [vmem:[%s118 + $0x1b8] sm:$0xff]
        %v196 = vld [vmem:[%s118 + $0x1c0] sm:$0xff]
        %v197 = vld [vmem:[%s118 + $0x1c8] sm:$0xff]
        %v198 = vld [vmem:[%s118 + $0x1d0] sm:$0xff]
        %v199 = vld [vmem:[%s118 + $0x1d8] sm:$0xff]
        %v200 = vld [vmem:[%s118 + $0x1e0] sm:$0xff]
        %v201 = vld [vmem:[%s118 + $0x1e8] sm:$0xff]
        %v202 = vld [vmem:[%s118 + $0x1f0] sm:$0xff]
        %v203 = vld [vmem:[%s118 + $0x1f8] sm:$0xff]
        %v204 = vld [vmem:[%s118 + $0x200] sm:$0xff]
        %v205 = vld [vmem:[%s118 + $0x208] sm:$0xff]
        %v206 = vld [vmem:[%s118 + $0x210] sm:$0xff]
        %v207 = vld [vmem:[%s118 + $0x218] sm:$0xff]
        %v208 = vld [vmem:[%s118 + $0x220] sm:$0xff]
        %v209 = vld [vmem:[%s118 + $0x228] sm:$0xff]
        %v210 = vld [vmem:[%s118 + $0x230] sm:$0xff]
        %v211 = vld [vmem:[%s118 + $0x238] sm:$0xff]
        %v212 = vld [vmem:[%s118 + $0x240] sm:$0xff]
        %v213 = vld [vmem:[%s118 + $0x248] sm:$0xff]
        %v214 = vld [vmem:[%s118 + $0x250] sm:$0xff]
        %v215 = vld [vmem:[%s118 + $0x258] sm:$0xff]
        %v216 = vld [vmem:[%s118 + $0x260] sm:$0xff]
        %v217 = vld [vmem:[%s118 + $0x268] sm:$0xff]
        %v218 = vld [vmem:[%s118 + $0x270] sm:$0xff]
        %v219 = vld [vmem:[%s118 + $0x278] sm:$0xff]
        %v220 = vld [vmem:[%s118 + $0x280] sm:$0xff]
        %v221 = vld [vmem:[%s118 + $0x288] sm:$0xff]
        %v222 = vld [vmem:[%s118 + $0x290] sm:$0xff]
        %v223 = vld [vmem:[%s118 + $0x298] sm:$0xff]
        %v224 = vld [vmem:[%s118 + $0x2a0] sm:$0xff]
        %v225 = vld [vmem:[%s118 + $0x2a8] sm:$0xff]
        %v226 = vld [vmem:[%s118 + $0x2b0] sm:$0xff]
        %v227 = vld [vmem:[%s118 + $0x2b8] sm:$0xff]
        %v228 = vld [vmem:[%s118 + $0x2c0] sm:$0xff]
        %v229 = vld [vmem:[%s118 + $0x2c8] sm:$0xff]
        %v230 = vld [vmem:[%s118 + $0x2d0] sm:$0xff]
        %v231 = vld [vmem:[%s118 + $0x2d8] sm:$0xff]
        %v232 = vld [vmem:[%s118 + $0x2e0] sm:$0xff]
        %v233 = vld [vmem:[%s118 + $0x2e8] sm:$0xff]
        %v234 = vld [vmem:[%s118 + $0x2f0] sm:$0xff]
        %v235 = vld [vmem:[%s118 + $0x2f8] sm:$0xff]
        %v236 = vld [vmem:[%s118 + $0x300] sm:$0xff]
        %v237 = vld [vmem:[%s118 + $0x308] sm:$0xff]
        %v238 = vld [vmem:[%s118 + $0x310] sm:$0xff]
        %v239 = vld [vmem:[%s118 + $0x318] sm:$0xff]
        %v240 = vld [vmem:[%s118 + $0x320] sm:$0xff]
        %v241 = vld [vmem:[%s118 + $0x328] sm:$0xff]
        %v242 = vld [vmem:[%s118 + $0x330] sm:$0xff]
        %v243 = vld [vmem:[%s118 + $0x338] sm:$0xff]
        %v244 = vld [vmem:[%s118 + $0x340] sm:$0xff]
        %v245 = vld [vmem:[%s118 + $0x348] sm:$0xff]
        %v246 = vld [vmem:[%s118 + $0x350] sm:$0xff]
        %v247 = vld [vmem:[%s118 + $0x358] sm:$0xff]
        %v248 = vld [vmem:[%s118 + $0x360] sm:$0xff]
        %v249 = vld [vmem:[%s118 + $0x368] sm:$0xff]
        %v250 = vld [vmem:[%s118 + $0x370] sm:$0xff]
        %v251 = vld [vmem:[%s118 + $0x378] sm:$0xff]
        %v252 = vld [vmem:[%s118 + $0x380] sm:$0xff]
        %v253 = vld [vmem:[%s118 + $0x388] sm:$0xff]
        %v254 = vld [vmem:[%s118 + $0x390] sm:$0xff]
        %v255 = vld [vmem:[%s118 + $0x398] sm:$0xff]
        %v256 = vld [vmem:[%s118 + $0x3a0] sm:$0xff]
        %v257 = vld [vmem:[%s118 + $0x3a8] sm:$0xff]
        %v258 = vld [vmem:[%s118 + $0x3b0] sm:$0xff]
        %v259 = vld [vmem:[%s118 + $0x3b8] sm:$0xff]
        %v260 = vld [vmem:[%s118 + $0x3c0] sm:$0xff]
        %v261 = vld [vmem:[%s118 + $0x3c8] sm:$0xff]
        %v262 = vld [vmem:[%s118 + $0x3d0] sm:$0xff]
        %v263 = vld [vmem:[%s118 + $0x3d8] sm:$0xff]
        %v264 = vld [vmem:[%s118 + $0x3e0] sm:$0xff]
        %v265 = vld [vmem:[%s118 + $0x3e8] sm:$0xff]
        %v266 = vld [vmem:[%s118 + $0x3f0] sm:$0xff]
        %v267 = vld [vmem:[%s118 + $0x3f8] sm:$0xff]
        %v268 = vsub.f32 0.0, %v140
        %v269 = vsub.f32 0.0, %v141
        %v270 = vsub.f32 0.0, %v142
        %v271 = vsub.f32 0.0, %v143
        %v272 = vsub.f32 0.0, %v144
        %v273 = vsub.f32 0.0, %v145
        %v274 = vsub.f32 0.0, %v146
        %v275 = vsub.f32 0.0, %v147
        %v276 = vsub.f32 0.0, %v148
        %v277 = vsub.f32 0.0, %v149
        %v278 = vsub.f32 0.0, %v150
        %v279 = vsub.f32 0.0, %v151
        %v280 = vsub.f32 0.0, %v152
        %v281 = vsub.f32 0.0, %v153
        %v282 = vsub.f32 0.0, %v154
        %v283 = vsub.f32 0.0, %v155
        %v284 = vsub.f32 0.0, %v156
        %v285 = vsub.f32 0.0, %v157
        %v286 = vsub.f32 0.0, %v158
        %v287 = vsub.f32 0.0, %v159
        %v288 = vsub.f32 0.0, %v160
        %v289 = vsub.f32 0.0, %v161
        %v290 = vsub.f32 0.0, %v162
        %v291 = vsub.f32 0.0, %v163
        %v292 = vsub.f32 0.0, %v164
        %v293 = vsub.f32 0.0, %v165
        %v294 = vsub.f32 0.0, %v166
        %v295 = vsub.f32 0.0, %v167
        %v296 = vsub.f32 0.0, %v168
        %v297 = vsub.f32 0.0, %v169
        %v298 = vsub.f32 0.0, %v170
        %v299 = vsub.f32 0.0, %v171
        %v300 = vsub.f32 0.0, %v172
        %v301 = vsub.f32 0.0, %v173
        %v302 = vsub.f32 0.0, %v174
        %v303 = vsub.f32 0.0, %v175
        %v304 = vsub.f32 0.0, %v176
        %v305 = vsub.f32 0.0, %v177
        %v306 = vsub.f32 0.0, %v178
        %v307 = vsub.f32 0.0, %v179
        %v308 = vsub.f32 0.0, %v180
        %v309 = vsub.f32 0.0, %v181
        %v310 = vsub.f32 0.0, %v182
        %v311 = vsub.f32 0.0, %v183
        %v312 = vsub.f32 0.0, %v184
        %v313 = vsub.f32 0.0, %v185
        %v314 = vsub.f32 0.0, %v186
        %v315 = vsub.f32 0.0, %v187
        %v316 = vsub.f32 0.0, %v188
        %v317 = vsub.f32 0.0, %v189
        %v318 = vsub.f32 0.0, %v190
        %v319 = vsub.f32 0.0, %v191
        %v320 = vsub.f32 0.0, %v192
        %v321 = vsub.f32 0.0, %v193
        %v322 = vsub.f32 0.0, %v194
        %v323 = vsub.f32 0.0, %v195
        %v324 = vsub.f32 0.0, %v196
        %v325 = vsub.f32 0.0, %v197
        %v326 = vsub.f32 0.0, %v198
        %v327 = vsub.f32 0.0, %v199
        %v328 = vsub.f32 0.0, %v200
        %v329 = vsub.f32 0.0, %v201
        %v330 = vsub.f32 0.0, %v202
        %v331 = vsub.f32 0.0, %v203
        %v332 = vsub.f32 0.0, %v204
        %v333 = vsub.f32 0.0, %v205
        %v334 = vsub.f32 0.0, %v206
        %v335 = vsub.f32 0.0, %v207
        %v336 = vsub.f32 0.0, %v208
        %v337 = vsub.f32 0.0, %v209
        %v338 = vsub.f32 0.0, %v210
        %v339 = vsub.f32 0.0, %v211
        %v340 = vsub.f32 0.0, %v212
        %v341 = vsub.f32 0.0, %v213
        %v342 = vsub.f32 0.0, %v214
        %v343 = vsub.f32 0.0, %v215
        %v344 = vsub.f32 0.0, %v216
        %v345 = vsub.f32 0.0, %v217
        %v346 = vsub.f32 0.0, %v218
        %v347 = vsub.f32 0.0, %v219
        %v348 = vsub.f32 0.0, %v220
        %v349 = vsub.f32 0.0, %v221
        %v350 = vsub.f32 0.0, %v222
        %v351 = vsub.f32 0.0, %v223
        %v352 = vsub.f32 0.0, %v224
        %v353 = vsub.f32 0.0, %v225
        %v354 = vsub.f32 0.0, %v226
        %v355 = vsub.f32 0.0, %v227
        %v356 = vsub.f32 0.0, %v228
        %v357 = vsub.f32 0.0, %v229
        %v358 = vsub.f32 0.0, %v230
        %v359 = vsub.f32 0.0, %v231
        %v360 = vsub.f32 0.0, %v232
        %v361 = vsub.f32 0.0, %v233
        %v362 = vsub.f32 0.0, %v234
        %v363 = vsub.f32 0.0, %v235
        %v364 = vsub.f32 0.0, %v236
        %v365 = vsub.f32 0.0, %v237
        %v366 = vsub.f32 0.0, %v238
        %v367 = vsub.f32 0.0, %v239
        %v368 = vsub.f32 0.0, %v240
        %v369 = vsub.f32 0.0, %v241
        %v370 = vsub.f32 0.0, %v242
        %v371 = vsub.f32 0.0, %v243
        %v372 = vsub.f32 0.0, %v244
        %v373 = vsub.f32 0.0, %v245
        %v374 = vsub.f32 0.0, %v246
        %v375 = vsub.f32 0.0, %v247
        %v376 = vsub.f32 0.0, %v248
        %v377 = vsub.f32 0.0, %v249
        %v378 = vsub.f32 0.0, %v250
        %v379 = vsub.f32 0.0, %v251
        %v380 = vsub.f32 0.0, %v252
        %v381 = vsub.f32 0.0, %v253
        %v382 = vsub.f32 0.0, %v254
        %v383 = vsub.f32 0.0, %v255
        %v384 = vsub.f32 0.0, %v256
        %v385 = vsub.f32 0.0, %v257
        %v386 = vsub.f32 0.0, %v258
        %v387 = vsub.f32 0.0, %v259
        %v388 = vsub.f32 0.0, %v260
        %v389 = vsub.f32 0.0, %v261
        %v390 = vsub.f32 0.0, %v262
        %v391 = vsub.f32 0.0, %v263
        %v392 = vsub.f32 0.0, %v264
        %v393 = vsub.f32 0.0, %v265
        %v394 = vsub.f32 0.0, %v266
        %v395 = vsub.f32 0.0, %v267
        %v396 = vmul.f32 %v268, 1.442695
        %v397 = vpow.pop %v396
        %v398 = vmul.f32 %v269, 1.442695
        %v399 = vpow.pop %v398
        %v400 = vmul.f32 %v270, 1.442695
        %v401 = vpow.pop %v400
        %v402 = vmul.f32 %v271, 1.442695
        %v403 = vpow.pop %v402
        %v404 = vmul.f32 %v272, 1.442695
        %v405 = vpow.pop %v404
        %v406 = vmul.f32 %v273, 1.442695
        %v407 = vpow.pop %v406
        %v408 = vmul.f32 %v274, 1.442695
        %v409 = vpow.pop %v408
        %v410 = vmul.f32 %v275, 1.442695
        %v411 = vpow.pop %v410
        %v412 = vmul.f32 %v276, 1.442695
        %v413 = vpow.pop %v412
        %v414 = vmul.f32 %v277, 1.442695
        %v415 = vpow.pop %v414
        %v416 = vmul.f32 %v278, 1.442695
        %v417 = vpow.pop %v416
        %v418 = vmul.f32 %v279, 1.442695
        %v419 = vpow.pop %v418
        %v420 = vmul.f32 %v280, 1.442695
        %v421 = vpow.pop %v420
        %v422 = vmul.f32 %v281, 1.442695
        %v423 = vpow.pop %v422
        %v424 = vmul.f32 %v282, 1.442695
        %v425 = vpow.pop %v424
        %v426 = vmul.f32 %v283, 1.442695
        %v427 = vpow.pop %v426
        %v428 = vmul.f32 %v284, 1.442695
        %v429 = vpow.pop %v428
        %v430 = vmul.f32 %v285, 1.442695
        %v431 = vpow.pop %v430
        %v432 = vmul.f32 %v286, 1.442695
        %v433 = vpow.pop %v432
        %v434 = vmul.f32 %v287, 1.442695
        %v435 = vpow.pop %v434
        %v436 = vmul.f32 %v288, 1.442695
        %v437 = vpow.pop %v436
        %v438 = vmul.f32 %v289, 1.442695
        %v439 = vpow.pop %v438
        %v440 = vmul.f32 %v290, 1.442695
        %v441 = vpow.pop %v440
        %v442 = vmul.f32 %v291, 1.442695
        %v443 = vpow.pop %v442
        %v444 = vmul.f32 %v292, 1.442695
        %v445 = vpow.pop %v444
        %v446 = vmul.f32 %v293, 1.442695
        %v447 = vpow.pop %v446
        %v448 = vmul.f32 %v294, 1.442695
        %v449 = vpow.pop %v448
        %v450 = vmul.f32 %v295, 1.442695
        %v451 = vpow.pop %v450
        %v452 = vmul.f32 %v296, 1.442695
        %v453 = vpow.pop %v452
        %v454 = vmul.f32 %v297, 1.442695
        %v455 = vpow.pop %v454
        %v456 = vmul.f32 %v298, 1.442695
        %v457 = vpow.pop %v456
        %v458 = vmul.f32 %v299, 1.442695
        %v459 = vpow.pop %v458
        %v460 = vmul.f32 %v300, 1.442695
        %v461 = vpow.pop %v460
        %v462 = vmul.f32 %v301, 1.442695
        %v463 = vpow.pop %v462
        %v464 = vmul.f32 %v302, 1.442695
        %v465 = vpow.pop %v464
        %v466 = vmul.f32 %v303, 1.442695
        %v467 = vpow.pop %v466
        %v468 = vmul.f32 %v304, 1.442695
        %v469 = vpow.pop %v468
        %v470 = vmul.f32 %v305, 1.442695
        %v471 = vpow.pop %v470
        %v472 = vmul.f32 %v306, 1.442695
        %v473 = vpow.pop %v472
        %v474 = vmul.f32 %v307, 1.442695
        %v475 = vpow.pop %v474
        %v476 = vmul.f32 %v308, 1.442695
        %v477 = vpow.pop %v476
        %v478 = vmul.f32 %v309, 1.442695
        %v479 = vpow.pop %v478
        %v480 = vmul.f32 %v310, 1.442695
        %v481 = vpow.pop %v480
        %v482 = vmul.f32 %v311, 1.442695
        %v483 = vpow.pop %v482
        %v484 = vmul.f32 %v312, 1.442695
        %v485 = vpow.pop %v484
        %v486 = vmul.f32 %v313, 1.442695
        %v487 = vpow.pop %v486
        %v488 = vmul.f32 %v314, 1.442695
        %v489 = vpow.pop %v488
        %v490 = vmul.f32 %v315, 1.442695
        %v491 = vpow.pop %v490
        %v492 = vmul.f32 %v316, 1.442695
        %v493 = vpow.pop %v492
        %v494 = vmul.f32 %v317, 1.442695
        %v495 = vpow.pop %v494
        %v496 = vmul.f32 %v318, 1.442695
        %v497 = vpow.pop %v496
        %v498 = vmul.f32 %v319, 1.442695
        %v499 = vpow.pop %v498
        %v500 = vmul.f32 %v320, 1.442695
        %v501 = vpow.pop %v500
        %v502 = vmul.f32 %v321, 1.442695
        %v503 = vpow.pop %v502
        %v504 = vmul.f32 %v322, 1.442695
        %v505 = vpow.pop %v504
        %v506 = vmul.f32 %v323, 1.442695
        %v507 = vpow.pop %v506
        %v508 = vmul.f32 %v324, 1.442695
        %v509 = vpow.pop %v508
        %v510 = vmul.f32 %v325, 1.442695
        %v511 = vpow.pop %v510
        %v512 = vmul.f32 %v326, 1.442695
        %v513 = vpow.pop %v512
        %v514 = vmul.f32 %v327, 1.442695
        %v515 = vpow.pop %v514
        %v516 = vmul.f32 %v328, 1.442695
        %v517 = vpow.pop %v516
        %v518 = vmul.f32 %v329, 1.442695
        %v519 = vpow.pop %v518
        %v520 = vmul.f32 %v330, 1.442695
        %v521 = vpow.pop %v520
        %v522 = vmul.f32 %v331, 1.442695
        %v523 = vpow.pop %v522
        %v524 = vmul.f32 %v332, 1.442695
        %v525 = vpow.pop %v524
        %v526 = vmul.f32 %v333, 1.442695
        %v527 = vpow.pop %v526
        %v528 = vmul.f32 %v334, 1.442695
        %v529 = vpow.pop %v528
        %v530 = vmul.f32 %v335, 1.442695
        %v531 = vpow.pop %v530
        %v532 = vmul.f32 %v336, 1.442695
        %v533 = vpow.pop %v532
        %v534 = vmul.f32 %v337, 1.442695
        %v535 = vpow.pop %v534
        %v536 = vmul.f32 %v338, 1.442695
        %v537 = vpow.pop %v536
        %v538 = vmul.f32 %v339, 1.442695
        %v539 = vpow.pop %v538
        %v540 = vmul.f32 %v340, 1.442695
        %v541 = vpow.pop %v540
        %v542 = vmul.f32 %v341, 1.442695
        %v543 = vpow.pop %v542
        %v544 = vmul.f32 %v342, 1.442695
        %v545 = vpow.pop %v544
        %v546 = vmul.f32 %v343, 1.442695
        %v547 = vpow.pop %v546
        %v548 = vmul.f32 %v344, 1.442695
        %v549 = vpow.pop %v548
        %v550 = vmul.f32 %v345, 1.442695
        %v551 = vpow.pop %v550
        %v552 = vmul.f32 %v346, 1.442695
        %v553 = vpow.pop %v552
        %v554 = vmul.f32 %v347, 1.442695
        %v555 = vpow.pop %v554
        %v556 = vmul.f32 %v348, 1.442695
        %v557 = vpow.pop %v556
        %v558 = vmul.f32 %v349, 1.442695
        %v559 = vpow.pop %v558
        %v560 = vmul.f32 %v350, 1.442695
        %v561 = vpow.pop %v560
        %v562 = vmul.f32 %v351, 1.442695
        %v563 = vpow.pop %v562
        %v564 = vmul.f32 %v352, 1.442695
        %v565 = vpow.pop %v564
        %v566 = vmul.f32 %v353, 1.442695
        %v567 = vpow.pop %v566
        %v568 = vmul.f32 %v354, 1.442695
        %v569 = vpow.pop %v568
        %v570 = vmul.f32 %v355, 1.442695
        %v571 = vpow.pop %v570
        %v572 = vmul.f32 %v356, 1.442695
        %v573 = vpow.pop %v572
        %v574 = vmul.f32 %v357, 1.442695
        %v575 = vpow.pop %v574
        %v576 = vmul.f32 %v358, 1.442695
        %v577 = vpow.pop %v576
        %v578 = vmul.f32 %v359, 1.442695
        %v579 = vpow.pop %v578
        %v580 = vmul.f32 %v360, 1.442695
        %v581 = vpow.pop %v580
        %v582 = vmul.f32 %v361, 1.442695
        %v583 = vpow.pop %v582
        %v584 = vmul.f32 %v362, 1.442695
        %v585 = vpow.pop %v584
        %v586 = vmul.f32 %v363, 1.442695
        %v587 = vpow.pop %v586
        %v588 = vmul.f32 %v364, 1.442695
        %v589 = vpow.pop %v588
        %v590 = vmul.f32 %v365, 1.442695
        %v591 = vpow.pop %v590
        %v592 = vmul.f32 %v366, 1.442695
        %v593 = vpow.pop %v592
        %v594 = vmul.f32 %v367, 1.442695
        %v595 = vpow.pop %v594
        %v596 = vmul.f32 %v368, 1.442695
        %v597 = vpow.pop %v596
        %v598 = vmul.f32 %v369, 1.442695
        %v599 = vpow.pop %v598
        %v600 = vmul.f32 %v370, 1.442695
        %v601 = vpow.pop %v600
        %v602 = vmul.f32 %v371, 1.442695
        %v603 = vpow.pop %v602
        %v604 = vmul.f32 %v372, 1.442695
        %v605 = vpow.pop %v604
        %v606 = vmul.f32 %v373, 1.442695
        %v607 = vpow.pop %v606
        %v608 = vmul.f32 %v374, 1.442695
        %v609 = vpow.pop %v608
        %v610 = vmul.f32 %v375, 1.442695
        %v611 = vpow.pop %v610
        %v612 = vmul.f32 %v376, 1.442695
        %v613 = vpow.pop %v612
        %v614 = vmul.f32 %v377, 1.442695
        %v615 = vpow.pop %v614
        %v616 = vmul.f32 %v378, 1.442695
        %v617 = vpow.pop %v616
        %v618 = vmul.f32 %v379, 1.442695
        %v619 = vpow.pop %v618
        %v620 = vmul.f32 %v380, 1.442695
        %v621 = vpow.pop %v620
        %v622 = vmul.f32 %v381, 1.442695
        %v623 = vpow.pop %v622
        %v624 = vmul.f32 %v382, 1.442695
        %v625 = vpow.pop %v624
        %v626 = vmul.f32 %v383, 1.442695
        %v627 = vpow.pop %v626
        %v628 = vmul.f32 %v384, 1.442695
        %v629 = vpow.pop %v628
        %v630 = vmul.f32 %v385, 1.442695
        %v631 = vpow.pop %v630
        %v632 = vmul.f32 %v386, 1.442695
        %v633 = vpow.pop %v632
        %v634 = vmul.f32 %v387, 1.442695
        %v635 = vpow.pop %v634
        %v636 = vmul.f32 %v388, 1.442695
        %v637 = vpow.pop %v636
        %v638 = vmul.f32 %v389, 1.442695
        %v639 = vpow.pop %v638
        %v640 = vmul.f32 %v390, 1.442695
        %v641 = vpow.pop %v640
        %v642 = vmul.f32 %v391, 1.442695
        %v643 = vpow.pop %v642
        %v644 = vmul.f32 %v392, 1.442695
        %v645 = vpow.pop %v644
        %v646 = vmul.f32 %v393, 1.442695
        %v647 = vpow.pop %v646
        %v648 = vmul.f32 %v394, 1.442695
        %v649 = vpow.pop %v648
        %v650 = vmul.f32 %v395, 1.442695
        %v651 = vpow.pop %v650
        %v652 = vadd.f32 %v397, 1.0
        %v653 = vadd.f32 %v399, 1.0
        %v654 = vadd.f32 %v401, 1.0
        %v655 = vadd.f32 %v403, 1.0
        %v656 = vadd.f32 %v405, 1.0
        %v657 = vadd.f32 %v407, 1.0
        %v658 = vadd.f32 %v409, 1.0
        %v659 = vadd.f32 %v411, 1.0
        %v660 = vadd.f32 %v413, 1.0
        %v661 = vadd.f32 %v415, 1.0
        %v662 = vadd.f32 %v417, 1.0
        %v663 = vadd.f32 %v419, 1.0
        %v664 = vadd.f32 %v421, 1.0
        %v665 = vadd.f32 %v423, 1.0
        %v666 = vadd.f32 %v425, 1.0
        %v667 = vadd.f32 %v427, 1.0
        %v668 = vadd.f32 %v429, 1.0
        %v669 = vadd.f32 %v431, 1.0
        %v670 = vadd.f32 %v433, 1.0
        %v671 = vadd.f32 %v435, 1.0
        %v672 = vadd.f32 %v437, 1.0
        %v673 = vadd.f32 %v439, 1.0
        %v674 = vadd.f32 %v441, 1.0
        %v675 = vadd.f32 %v443, 1.0
        %v676 = vadd.f32 %v445, 1.0
        %v677 = vadd.f32 %v447, 1.0
        %v678 = vadd.f32 %v449, 1.0
        %v679 = vadd.f32 %v451, 1.0
        %v680 = vadd.f32 %v453, 1.0
        %v681 = vadd.f32 %v455, 1.0
        %v682 = vadd.f32 %v457, 1.0
        %v683 = vadd.f32 %v459, 1.0
        %v684 = vadd.f32 %v461, 1.0
        %v685 = vadd.f32 %v463, 1.0
        %v686 = vadd.f32 %v465, 1.0
        %v687 = vadd.f32 %v467, 1.0
        %v688 = vadd.f32 %v469, 1.0
        %v689 = vadd.f32 %v471, 1.0
        %v690 = vadd.f32 %v473, 1.0
        %v691 = vadd.f32 %v475, 1.0
        %v692 = vadd.f32 %v477, 1.0
        %v693 = vadd.f32 %v479, 1.0
        %v694 = vadd.f32 %v481, 1.0
        %v695 = vadd.f32 %v483, 1.0
        %v696 = vadd.f32 %v485, 1.0
        %v697 = vadd.f32 %v487, 1.0
        %v698 = vadd.f32 %v489, 1.0
        %v699 = vadd.f32 %v491, 1.0
        %v700 = vadd.f32 %v493, 1.0
        %v701 = vadd.f32 %v495, 1.0
        %v702 = vadd.f32 %v497, 1.0
        %v703 = vadd.f32 %v499, 1.0
        %v704 = vadd.f32 %v501, 1.0
        %v705 = vadd.f32 %v503, 1.0
        %v706 = vadd.f32 %v505, 1.0
        %v707 = vadd.f32 %v507, 1.0
        %v708 = vadd.f32 %v509, 1.0
        %v709 = vadd.f32 %v511, 1.0
        %v710 = vadd.f32 %v513, 1.0
        %v711 = vadd.f32 %v515, 1.0
        %v712 = vadd.f32 %v517, 1.0
        %v713 = vadd.f32 %v519, 1.0
        %v714 = vadd.f32 %v521, 1.0
        %v715 = vadd.f32 %v523, 1.0
        %v716 = vadd.f32 %v525, 1.0
        %v717 = vadd.f32 %v527, 1.0
        %v718 = vadd.f32 %v529, 1.0
        %v719 = vadd.f32 %v531, 1.0
        %v720 = vadd.f32 %v533, 1.0
        %v721 = vadd.f32 %v535, 1.0
        %v722 = vadd.f32 %v537, 1.0
        %v723 = vadd.f32 %v539, 1.0
        %v724 = vadd.f32 %v541, 1.0
        %v725 = vadd.f32 %v543, 1.0
        %v726 = vadd.f32 %v545, 1.0
        %v727 = vadd.f32 %v547, 1.0
        %v728 = vadd.f32 %v549, 1.0
        %v729 = vadd.f32 %v551, 1.0
        %v730 = vadd.f32 %v553, 1.0
        %v731 = vadd.f32 %v555, 1.0
        %v732 = vadd.f32 %v557, 1.0
        %v733 = vadd.f32 %v559, 1.0
        %v734 = vadd.f32 %v561, 1.0
        %v735 = vadd.f32 %v563, 1.0
        %v736 = vadd.f32 %v565, 1.0
        %v737 = vadd.f32 %v567, 1.0
        %v738 = vadd.f32 %v569, 1.0
        %v739 = vadd.f32 %v571, 1.0
        %v740 = vadd.f32 %v573, 1.0
        %v741 = vadd.f32 %v575, 1.0
        %v742 = vadd.f32 %v577, 1.0
        %v743 = vadd.f32 %v579, 1.0
        %v744 = vadd.f32 %v581, 1.0
        %v745 = vadd.f32 %v583, 1.0
        %v746 = vadd.f32 %v585, 1.0
        %v747 = vadd.f32 %v587, 1.0
        %v748 = vadd.f32 %v589, 1.0
        %v749 = vadd.f32 %v591, 1.0
        %v750 = vadd.f32 %v593, 1.0
        %v751 = vadd.f32 %v595, 1.0
        %v752 = vadd.f32 %v597, 1.0
        %v753 = vadd.f32 %v599, 1.0
        %v754 = vadd.f32 %v601, 1.0
        %v755 = vadd.f32 %v603, 1.0
        %v756 = vadd.f32 %v605, 1.0
        %v757 = vadd.f32 %v607, 1.0
        %v758 = vadd.f32 %v609, 1.0
        %v759 = vadd.f32 %v611, 1.0
        %v760 = vadd.f32 %v613, 1.0
        %v761 = vadd.f32 %v615, 1.0
        %v762 = vadd.f32 %v617, 1.0
        %v763 = vadd.f32 %v619, 1.0
        %v764 = vadd.f32 %v621, 1.0
        %v765 = vadd.f32 %v623, 1.0
        %v766 = vadd.f32 %v625, 1.0
        %v767 = vadd.f32 %v627, 1.0
        %v768 = vadd.f32 %v629, 1.0
        %v769 = vadd.f32 %v631, 1.0
        %v770 = vadd.f32 %v633, 1.0
        %v771 = vadd.f32 %v635, 1.0
        %v772 = vadd.f32 %v637, 1.0
        %v773 = vadd.f32 %v639, 1.0
        %v774 = vadd.f32 %v641, 1.0
        %v775 = vadd.f32 %v643, 1.0
        %v776 = vadd.f32 %v645, 1.0
        %v777 = vadd.f32 %v647, 1.0
        %v778 = vadd.f32 %v649, 1.0
        %v779 = vadd.f32 %v651, 1.0
        %v780 = vrcp.pop %v652
        %v781 = vmul.f32 %v652, %v780
        %v782 = vsub.f32 1.0, %v781
        %v783 = vmul.f32 %v780, %v782
        %v784 = vadd.f32 %v780, %v783
        %vm785 = vweird.f32 %v652
        %vm786 = vweird.f32 %v780
        %vm787 = vmor %vm785, %vm786
        %v788 = vsel %vm787, %v780, %v784
        %v789 = vand.u32 2147483647, %v652
        %vm790 = vcmp.eq.f32.partialorder %v789, 8.507059e+37
        %v791 = vand.u32 %v652, 2147483648
        %v792 = vor.u32 1.1754944e-38, %v791
        %v793 = vsel %vm790, %v792, %v788
        %v794 = vrcp.pop %v653
        %v795 = vmul.f32 %v653, %v794
        %v796 = vsub.f32 1.0, %v795
        %v797 = vmul.f32 %v794, %v796
        %v798 = vadd.f32 %v794, %v797
        %vm799 = vweird.f32 %v653
        %vm800 = vweird.f32 %v794
        %vm801 = vmor %vm799, %vm800
        %v802 = vsel %vm801, %v794, %v798
        %v803 = vand.u32 2147483647, %v653
        %vm804 = vcmp.eq.f32.partialorder %v803, 8.507059e+37
        %v805 = vand.u32 %v653, 2147483648
        %v806 = vor.u32 1.1754944e-38, %v805
        %v807 = vsel %vm804, %v806, %v802
        %v808 = vrcp.pop %v654
        %v809 = vmul.f32 %v654, %v808
        %v810 = vsub.f32 1.0, %v809
        %v811 = vmul.f32 %v808, %v810
        %v812 = vadd.f32 %v808, %v811
        %vm813 = vweird.f32 %v654
        %vm814 = vweird.f32 %v808
        %vm815 = vmor %vm813, %vm814
        %v816 = vsel %vm815, %v808, %v812
        %v817 = vand.u32 2147483647, %v654
        %vm818 = vcmp.eq.f32.partialorder %v817, 8.507059e+37
        %v819 = vand.u32 %v654, 2147483648
        %v820 = vor.u32 1.1754944e-38, %v819
        %v821 = vsel %vm818, %v820, %v816
        %v822 = vrcp.pop %v655
        %v823 = vmul.f32 %v655, %v822
        %v824 = vsub.f32 1.0, %v823
        %v825 = vmul.f32 %v822, %v824
        %v826 = vadd.f32 %v822, %v825
        %vm827 = vweird.f32 %v655
        %vm828 = vweird.f32 %v822
        %vm829 = vmor %vm827, %vm828
        %v830 = vsel %vm829, %v822, %v826
        %v831 = vand.u32 2147483647, %v655
        %vm832 = vcmp.eq.f32.partialorder %v831, 8.507059e+37
        %v833 = vand.u32 %v655, 2147483648
        %v834 = vor.u32 1.1754944e-38, %v833
        %v835 = vsel %vm832, %v834, %v830
        %v836 = vrcp.pop %v656
        %v837 = vmul.f32 %v656, %v836
        %v838 = vsub.f32 1.0, %v837
        %v839 = vmul.f32 %v836, %v838
        %v840 = vadd.f32 %v836, %v839
        %vm841 = vweird.f32 %v656
        %vm842 = vweird.f32 %v836
        %vm843 = vmor %vm841, %vm842
        %v844 = vsel %vm843, %v836, %v840
        %v845 = vand.u32 2147483647, %v656
        %vm846 = vcmp.eq.f32.partialorder %v845, 8.507059e+37
        %v847 = vand.u32 %v656, 2147483648
        %v848 = vor.u32 1.1754944e-38, %v847
        %v849 = vsel %vm846, %v848, %v844
        %v850 = vrcp.pop %v657
        %v851 = vmul.f32 %v657, %v850
        %v852 = vsub.f32 1.0, %v851
        %v853 = vmul.f32 %v850, %v852
        %v854 = vadd.f32 %v850, %v853
        %vm855 = vweird.f32 %v657
        %vm856 = vweird.f32 %v850
        %vm857 = vmor %vm855, %vm856
        %v858 = vsel %vm857, %v850, %v854
        %v859 = vand.u32 2147483647, %v657
        %vm860 = vcmp.eq.f32.partialorder %v859, 8.507059e+37
        %v861 = vand.u32 %v657, 2147483648
        %v862 = vor.u32 1.1754944e-38, %v861
        %v863 = vsel %vm860, %v862, %v858
        %v864 = vrcp.pop %v658
        %v865 = vmul.f32 %v658, %v864
        %v866 = vsub.f32 1.0, %v865
        %v867 = vmul.f32 %v864, %v866
        %v868 = vadd.f32 %v864, %v867
        %vm869 = vweird.f32 %v658
        %vm870 = vweird.f32 %v864
        %vm871 = vmor %vm869, %vm870
        %v872 = vsel %vm871, %v864, %v868
        %v873 = vand.u32 2147483647, %v658
        %vm874 = vcmp.eq.f32.partialorder %v873, 8.507059e+37
        %v875 = vand.u32 %v658, 2147483648
        %v876 = vor.u32 1.1754944e-38, %v875
        %v877 = vsel %vm874, %v876, %v872
        %v878 = vrcp.pop %v659
        %v879 = vmul.f32 %v659, %v878
        %v880 = vsub.f32 1.0, %v879
        %v881 = vmul.f32 %v878, %v880
        %v882 = vadd.f32 %v878, %v881
        %vm883 = vweird.f32 %v659
        %vm884 = vweird.f32 %v878
        %vm885 = vmor %vm883, %vm884
        %v886 = vsel %vm885, %v878, %v882
        %v887 = vand.u32 2147483647, %v659
        %vm888 = vcmp.eq.f32.partialorder %v887, 8.507059e+37
        %v889 = vand.u32 %v659, 2147483648
        %v890 = vor.u32 1.1754944e-38, %v889
        %v891 = vsel %vm888, %v890, %v886
        %v892 = vrcp.pop %v660
        %v893 = vmul.f32 %v660, %v892
        %v894 = vsub.f32 1.0, %v893
        %v895 = vmul.f32 %v892, %v894
        %v896 = vadd.f32 %v892, %v895
        %vm897 = vweird.f32 %v660
        %vm898 = vweird.f32 %v892
        %vm899 = vmor %vm897, %vm898
        %v900 = vsel %vm899, %v892, %v896
        %v901 = vand.u32 2147483647, %v660
        %vm902 = vcmp.eq.f32.partialorder %v901, 8.507059e+37
        %v903 = vand.u32 %v660, 2147483648
        %v904 = vor.u32 1.1754944e-38, %v903
        %v905 = vsel %vm902, %v904, %v900
        %v906 = vrcp.pop %v661
        %v907 = vmul.f32 %v661, %v906
        %v908 = vsub.f32 1.0, %v907
        %v909 = vmul.f32 %v906, %v908
        %v910 = vadd.f32 %v906, %v909
        %vm911 = vweird.f32 %v661
        %vm912 = vweird.f32 %v906
        %vm913 = vmor %vm911, %vm912
        %v914 = vsel %vm913, %v906, %v910
        %v915 = vand.u32 2147483647, %v661
        %vm916 = vcmp.eq.f32.partialorder %v915, 8.507059e+37
        %v917 = vand.u32 %v661, 2147483648
        %v918 = vor.u32 1.1754944e-38, %v917
        %v919 = vsel %vm916, %v918, %v914
        %v920 = vrcp.pop %v662
        %v921 = vmul.f32 %v662, %v920
        %v922 = vsub.f32 1.0, %v921
        %v923 = vmul.f32 %v920, %v922
        %v924 = vadd.f32 %v920, %v923
        %vm925 = vweird.f32 %v662
        %vm926 = vweird.f32 %v920
        %vm927 = vmor %vm925, %vm926
        %v928 = vsel %vm927, %v920, %v924
        %v929 = vand.u32 2147483647, %v662
        %vm930 = vcmp.eq.f32.partialorder %v929, 8.507059e+37
        %v931 = vand.u32 %v662, 2147483648
        %v932 = vor.u32 1.1754944e-38, %v931
        %v933 = vsel %vm930, %v932, %v928
        %v934 = vrcp.pop %v663
        %v935 = vmul.f32 %v663, %v934
        %v936 = vsub.f32 1.0, %v935
        %v937 = vmul.f32 %v934, %v936
        %v938 = vadd.f32 %v934, %v937
        %vm939 = vweird.f32 %v663
        %vm940 = vweird.f32 %v934
        %vm941 = vmor %vm939, %vm940
        %v942 = vsel %vm941, %v934, %v938
        %v943 = vand.u32 2147483647, %v663
        %vm944 = vcmp.eq.f32.partialorder %v943, 8.507059e+37
        %v945 = vand.u32 %v663, 2147483648
        %v946 = vor.u32 1.1754944e-38, %v945
        %v947 = vsel %vm944, %v946, %v942
        %v948 = vrcp.pop %v664
        %v949 = vmul.f32 %v664, %v948
        %v950 = vsub.f32 1.0, %v949
        %v951 = vmul.f32 %v948, %v950
        %v952 = vadd.f32 %v948, %v951
        %vm953 = vweird.f32 %v664
        %vm954 = vweird.f32 %v948
        %vm955 = vmor %vm953, %vm954
        %v956 = vsel %vm955, %v948, %v952
        %v957 = vand.u32 2147483647, %v664
        %vm958 = vcmp.eq.f32.partialorder %v957, 8.507059e+37
        %v959 = vand.u32 %v664, 2147483648
        %v960 = vor.u32 1.1754944e-38, %v959
        %v961 = vsel %vm958, %v960, %v956
        %v962 = vrcp.pop %v665
        %v963 = vmul.f32 %v665, %v962
        %v964 = vsub.f32 1.0, %v963
        %v965 = vmul.f32 %v962, %v964
        %v966 = vadd.f32 %v962, %v965
        %vm967 = vweird.f32 %v665
        %vm968 = vweird.f32 %v962
        %vm969 = vmor %vm967, %vm968
        %v970 = vsel %vm969, %v962, %v966
        %v971 = vand.u32 2147483647, %v665
        %vm972 = vcmp.eq.f32.partialorder %v971, 8.507059e+37
        %v973 = vand.u32 %v665, 2147483648
        %v974 = vor.u32 1.1754944e-38, %v973
        %v975 = vsel %vm972, %v974, %v970
        %v976 = vrcp.pop %v666
        %v977 = vmul.f32 %v666, %v976
        %v978 = vsub.f32 1.0, %v977
        %v979 = vmul.f32 %v976, %v978
        %v980 = vadd.f32 %v976, %v979
        %vm981 = vweird.f32 %v666
        %vm982 = vweird.f32 %v976
        %vm983 = vmor %vm981, %vm982
        %v984 = vsel %vm983, %v976, %v980
        %v985 = vand.u32 2147483647, %v666
        %vm986 = vcmp.eq.f32.partialorder %v985, 8.507059e+37
        %v987 = vand.u32 %v666, 2147483648
        %v988 = vor.u32 1.1754944e-38, %v987
        %v989 = vsel %vm986, %v988, %v984
        %v990 = vrcp.pop %v667
        %v991 = vmul.f32 %v667, %v990
        %v992 = vsub.f32 1.0, %v991
        %v993 = vmul.f32 %v990, %v992
        %v994 = vadd.f32 %v990, %v993
        %vm995 = vweird.f32 %v667
        %vm996 = vweird.f32 %v990
        %vm997 = vmor %vm995, %vm996
        %v998 = vsel %vm997, %v990, %v994
        %v999 = vand.u32 2147483647, %v667
        %vm1000 = vcmp.eq.f32.partialorder %v999, 8.507059e+37
        %v1001 = vand.u32 %v667, 2147483648
        %v1002 = vor.u32 1.1754944e-38, %v1001
        %v1003 = vsel %vm1000, %v1002, %v998
        %v1004 = vrcp.pop %v668
        %v1005 = vmul.f32 %v668, %v1004
        %v1006 = vsub.f32 1.0, %v1005
        %v1007 = vmul.f32 %v1004, %v1006
        %v1008 = vadd.f32 %v1004, %v1007
        %vm1009 = vweird.f32 %v668
        %vm1010 = vweird.f32 %v1004
        %vm1011 = vmor %vm1009, %vm1010
        %v1012 = vsel %vm1011, %v1004, %v1008
        %v1013 = vand.u32 2147483647, %v668
        %vm1014 = vcmp.eq.f32.partialorder %v1013, 8.507059e+37
        %v1015 = vand.u32 %v668, 2147483648
        %v1016 = vor.u32 1.1754944e-38, %v1015
        %v1017 = vsel %vm1014, %v1016, %v1012
        %v1018 = vrcp.pop %v669
        %v1019 = vmul.f32 %v669, %v1018
        %v1020 = vsub.f32 1.0, %v1019
        %v1021 = vmul.f32 %v1018, %v1020
        %v1022 = vadd.f32 %v1018, %v1021
        %vm1023 = vweird.f32 %v669
        %vm1024 = vweird.f32 %v1018
        %vm1025 = vmor %vm1023, %vm1024
        %v1026 = vsel %vm1025, %v1018, %v1022
        %v1027 = vand.u32 2147483647, %v669
        %vm1028 = vcmp.eq.f32.partialorder %v1027, 8.507059e+37
        %v1029 = vand.u32 %v669, 2147483648
        %v1030 = vor.u32 1.1754944e-38, %v1029
        %v1031 = vsel %vm1028, %v1030, %v1026
        %v1032 = vrcp.pop %v670
        %v1033 = vmul.f32 %v670, %v1032
        %v1034 = vsub.f32 1.0, %v1033
        %v1035 = vmul.f32 %v1032, %v1034
        %v1036 = vadd.f32 %v1032, %v1035
        %vm1037 = vweird.f32 %v670
        %vm1038 = vweird.f32 %v1032
        %vm1039 = vmor %vm1037, %vm1038
        %v1040 = vsel %vm1039, %v1032, %v1036
        %v1041 = vand.u32 2147483647, %v670
        %vm1042 = vcmp.eq.f32.partialorder %v1041, 8.507059e+37
        %v1043 = vand.u32 %v670, 2147483648
        %v1044 = vor.u32 1.1754944e-38, %v1043
        %v1045 = vsel %vm1042, %v1044, %v1040
        %v1046 = vrcp.pop %v671
        %v1047 = vmul.f32 %v671, %v1046
        %v1048 = vsub.f32 1.0, %v1047
        %v1049 = vmul.f32 %v1046, %v1048
        %v1050 = vadd.f32 %v1046, %v1049
        %vm1051 = vweird.f32 %v671
        %vm1052 = vweird.f32 %v1046
        %vm1053 = vmor %vm1051, %vm1052
        %v1054 = vsel %vm1053, %v1046, %v1050
        %v1055 = vand.u32 2147483647, %v671
        %vm1056 = vcmp.eq.f32.partialorder %v1055, 8.507059e+37
        %v1057 = vand.u32 %v671, 2147483648
        %v1058 = vor.u32 1.1754944e-38, %v1057
        %v1059 = vsel %vm1056, %v1058, %v1054
        %v1060 = vrcp.pop %v672
        %v1061 = vmul.f32 %v672, %v1060
        %v1062 = vsub.f32 1.0, %v1061
        %v1063 = vmul.f32 %v1060, %v1062
        %v1064 = vadd.f32 %v1060, %v1063
        %vm1065 = vweird.f32 %v672
        %vm1066 = vweird.f32 %v1060
        %vm1067 = vmor %vm1065, %vm1066
        %v1068 = vsel %vm1067, %v1060, %v1064
        %v1069 = vand.u32 2147483647, %v672
        %vm1070 = vcmp.eq.f32.partialorder %v1069, 8.507059e+37
        %v1071 = vand.u32 %v672, 2147483648
        %v1072 = vor.u32 1.1754944e-38, %v1071
        %v1073 = vsel %vm1070, %v1072, %v1068
        %v1074 = vrcp.pop %v673
        %v1075 = vmul.f32 %v673, %v1074
        %v1076 = vsub.f32 1.0, %v1075
        %v1077 = vmul.f32 %v1074, %v1076
        %v1078 = vadd.f32 %v1074, %v1077
        %vm1079 = vweird.f32 %v673
        %vm1080 = vweird.f32 %v1074
        %vm1081 = vmor %vm1079, %vm1080
        %v1082 = vsel %vm1081, %v1074, %v1078
        %v1083 = vand.u32 2147483647, %v673
        %vm1084 = vcmp.eq.f32.partialorder %v1083, 8.507059e+37
        %v1085 = vand.u32 %v673, 2147483648
        %v1086 = vor.u32 1.1754944e-38, %v1085
        %v1087 = vsel %vm1084, %v1086, %v1082
        %v1088 = vrcp.pop %v674
        %v1089 = vmul.f32 %v674, %v1088
        %v1090 = vsub.f32 1.0, %v1089
        %v1091 = vmul.f32 %v1088, %v1090
        %v1092 = vadd.f32 %v1088, %v1091
        %vm1093 = vweird.f32 %v674
        %vm1094 = vweird.f32 %v1088
        %vm1095 = vmor %vm1093, %vm1094
        %v1096 = vsel %vm1095, %v1088, %v1092
        %v1097 = vand.u32 2147483647, %v674
        %vm1098 = vcmp.eq.f32.partialorder %v1097, 8.507059e+37
        %v1099 = vand.u32 %v674, 2147483648
        %v1100 = vor.u32 1.1754944e-38, %v1099
        %v1101 = vsel %vm1098, %v1100, %v1096
        %v1102 = vrcp.pop %v675
        %v1103 = vmul.f32 %v675, %v1102
        %v1104 = vsub.f32 1.0, %v1103
        %v1105 = vmul.f32 %v1102, %v1104
        %v1106 = vadd.f32 %v1102, %v1105
        %vm1107 = vweird.f32 %v675
        %vm1108 = vweird.f32 %v1102
        %vm1109 = vmor %vm1107, %vm1108
        %v1110 = vsel %vm1109, %v1102, %v1106
        %v1111 = vand.u32 2147483647, %v675
        %vm1112 = vcmp.eq.f32.partialorder %v1111, 8.507059e+37
        %v1113 = vand.u32 %v675, 2147483648
        %v1114 = vor.u32 1.1754944e-38, %v1113
        %v1115 = vsel %vm1112, %v1114, %v1110
        %v1116 = vrcp.pop %v676
        %v1117 = vmul.f32 %v676, %v1116
        %v1118 = vsub.f32 1.0, %v1117
        %v1119 = vmul.f32 %v1116, %v1118
        %v1120 = vadd.f32 %v1116, %v1119
        %vm1121 = vweird.f32 %v676
        %vm1122 = vweird.f32 %v1116
        %vm1123 = vmor %vm1121, %vm1122
        %v1124 = vsel %vm1123, %v1116, %v1120
        %v1125 = vand.u32 2147483647, %v676
        %vm1126 = vcmp.eq.f32.partialorder %v1125, 8.507059e+37
        %v1127 = vand.u32 %v676, 2147483648
        %v1128 = vor.u32 1.1754944e-38, %v1127
        %v1129 = vsel %vm1126, %v1128, %v1124
        %v1130 = vrcp.pop %v677
        %v1131 = vmul.f32 %v677, %v1130
        %v1132 = vsub.f32 1.0, %v1131
        %v1133 = vmul.f32 %v1130, %v1132
        %v1134 = vadd.f32 %v1130, %v1133
        %vm1135 = vweird.f32 %v677
        %vm1136 = vweird.f32 %v1130
        %vm1137 = vmor %vm1135, %vm1136
        %v1138 = vsel %vm1137, %v1130, %v1134
        %v1139 = vand.u32 2147483647, %v677
        %vm1140 = vcmp.eq.f32.partialorder %v1139, 8.507059e+37
        %v1141 = vand.u32 %v677, 2147483648
        %v1142 = vor.u32 1.1754944e-38, %v1141
        %v1143 = vsel %vm1140, %v1142, %v1138
        %v1144 = vrcp.pop %v678
        %v1145 = vmul.f32 %v678, %v1144
        %v1146 = vsub.f32 1.0, %v1145
        %v1147 = vmul.f32 %v1144, %v1146
        %v1148 = vadd.f32 %v1144, %v1147
        %vm1149 = vweird.f32 %v678
        %vm1150 = vweird.f32 %v1144
        %vm1151 = vmor %vm1149, %vm1150
        %v1152 = vsel %vm1151, %v1144, %v1148
        %v1153 = vand.u32 2147483647, %v678
        %vm1154 = vcmp.eq.f32.partialorder %v1153, 8.507059e+37
        %v1155 = vand.u32 %v678, 2147483648
        %v1156 = vor.u32 1.1754944e-38, %v1155
        %v1157 = vsel %vm1154, %v1156, %v1152
        %v1158 = vrcp.pop %v679
        %v1159 = vmul.f32 %v679, %v1158
        %v1160 = vsub.f32 1.0, %v1159
        %v1161 = vmul.f32 %v1158, %v1160
        %v1162 = vadd.f32 %v1158, %v1161
        %vm1163 = vweird.f32 %v679
        %vm1164 = vweird.f32 %v1158
        %vm1165 = vmor %vm1163, %vm1164
        %v1166 = vsel %vm1165, %v1158, %v1162
        %v1167 = vand.u32 2147483647, %v679
        %vm1168 = vcmp.eq.f32.partialorder %v1167, 8.507059e+37
        %v1169 = vand.u32 %v679, 2147483648
        %v1170 = vor.u32 1.1754944e-38, %v1169
        %v1171 = vsel %vm1168, %v1170, %v1166
        %v1172 = vrcp.pop %v680
        %v1173 = vmul.f32 %v680, %v1172
        %v1174 = vsub.f32 1.0, %v1173
        %v1175 = vmul.f32 %v1172, %v1174
        %v1176 = vadd.f32 %v1172, %v1175
        %vm1177 = vweird.f32 %v680
        %vm1178 = vweird.f32 %v1172
        %vm1179 = vmor %vm1177, %vm1178
        %v1180 = vsel %vm1179, %v1172, %v1176
        %v1181 = vand.u32 2147483647, %v680
        %vm1182 = vcmp.eq.f32.partialorder %v1181, 8.507059e+37
        %v1183 = vand.u32 %v680, 2147483648
        %v1184 = vor.u32 1.1754944e-38, %v1183
        %v1185 = vsel %vm1182, %v1184, %v1180
        %v1186 = vrcp.pop %v681
        %v1187 = vmul.f32 %v681, %v1186
        %v1188 = vsub.f32 1.0, %v1187
        %v1189 = vmul.f32 %v1186, %v1188
        %v1190 = vadd.f32 %v1186, %v1189
        %vm1191 = vweird.f32 %v681
        %vm1192 = vweird.f32 %v1186
        %vm1193 = vmor %vm1191, %vm1192
        %v1194 = vsel %vm1193, %v1186, %v1190
        %v1195 = vand.u32 2147483647, %v681
        %vm1196 = vcmp.eq.f32.partialorder %v1195, 8.507059e+37
        %v1197 = vand.u32 %v681, 2147483648
        %v1198 = vor.u32 1.1754944e-38, %v1197
        %v1199 = vsel %vm1196, %v1198, %v1194
        %v1200 = vrcp.pop %v682
        %v1201 = vmul.f32 %v682, %v1200
        %v1202 = vsub.f32 1.0, %v1201
        %v1203 = vmul.f32 %v1200, %v1202
        %v1204 = vadd.f32 %v1200, %v1203
        %vm1205 = vweird.f32 %v682
        %vm1206 = vweird.f32 %v1200
        %vm1207 = vmor %vm1205, %vm1206
        %v1208 = vsel %vm1207, %v1200, %v1204
        %v1209 = vand.u32 2147483647, %v682
        %vm1210 = vcmp.eq.f32.partialorder %v1209, 8.507059e+37
        %v1211 = vand.u32 %v682, 2147483648
        %v1212 = vor.u32 1.1754944e-38, %v1211
        %v1213 = vsel %vm1210, %v1212, %v1208
        %v1214 = vrcp.pop %v683
        %v1215 = vmul.f32 %v683, %v1214
        %v1216 = vsub.f32 1.0, %v1215
        %v1217 = vmul.f32 %v1214, %v1216
        %v1218 = vadd.f32 %v1214, %v1217
        %vm1219 = vweird.f32 %v683
        %vm1220 = vweird.f32 %v1214
        %vm1221 = vmor %vm1219, %vm1220
        %v1222 = vsel %vm1221, %v1214, %v1218
        %v1223 = vand.u32 2147483647, %v683
        %vm1224 = vcmp.eq.f32.partialorder %v1223, 8.507059e+37
        %v1225 = vand.u32 %v683, 2147483648
        %v1226 = vor.u32 1.1754944e-38, %v1225
        %v1227 = vsel %vm1224, %v1226, %v1222
        %v1228 = vrcp.pop %v684
        %v1229 = vmul.f32 %v684, %v1228
        %v1230 = vsub.f32 1.0, %v1229
        %v1231 = vmul.f32 %v1228, %v1230
        %v1232 = vadd.f32 %v1228, %v1231
        %vm1233 = vweird.f32 %v684
        %vm1234 = vweird.f32 %v1228
        %vm1235 = vmor %vm1233, %vm1234
        %v1236 = vsel %vm1235, %v1228, %v1232
        %v1237 = vand.u32 2147483647, %v684
        %vm1238 = vcmp.eq.f32.partialorder %v1237, 8.507059e+37
        %v1239 = vand.u32 %v684, 2147483648
        %v1240 = vor.u32 1.1754944e-38, %v1239
        %v1241 = vsel %vm1238, %v1240, %v1236
        %v1242 = vrcp.pop %v685
        %v1243 = vmul.f32 %v685, %v1242
        %v1244 = vsub.f32 1.0, %v1243
        %v1245 = vmul.f32 %v1242, %v1244
        %v1246 = vadd.f32 %v1242, %v1245
        %vm1247 = vweird.f32 %v685
        %vm1248 = vweird.f32 %v1242
        %vm1249 = vmor %vm1247, %vm1248
        %v1250 = vsel %vm1249, %v1242, %v1246
        %v1251 = vand.u32 2147483647, %v685
        %vm1252 = vcmp.eq.f32.partialorder %v1251, 8.507059e+37
        %v1253 = vand.u32 %v685, 2147483648
        %v1254 = vor.u32 1.1754944e-38, %v1253
        %v1255 = vsel %vm1252, %v1254, %v1250
        %v1256 = vrcp.pop %v686
        %v1257 = vmul.f32 %v686, %v1256
        %v1258 = vsub.f32 1.0, %v1257
        %v1259 = vmul.f32 %v1256, %v1258
        %v1260 = vadd.f32 %v1256, %v1259
        %vm1261 = vweird.f32 %v686
        %vm1262 = vweird.f32 %v1256
        %vm1263 = vmor %vm1261, %vm1262
        %v1264 = vsel %vm1263, %v1256, %v1260
        %v1265 = vand.u32 2147483647, %v686
        %vm1266 = vcmp.eq.f32.partialorder %v1265, 8.507059e+37
        %v1267 = vand.u32 %v686, 2147483648
        %v1268 = vor.u32 1.1754944e-38, %v1267
        %v1269 = vsel %vm1266, %v1268, %v1264
        %v1270 = vrcp.pop %v687
        %v1271 = vmul.f32 %v687, %v1270
        %v1272 = vsub.f32 1.0, %v1271
        %v1273 = vmul.f32 %v1270, %v1272
        %v1274 = vadd.f32 %v1270, %v1273
        %vm1275 = vweird.f32 %v687
        %vm1276 = vweird.f32 %v1270
        %vm1277 = vmor %vm1275, %vm1276
        %v1278 = vsel %vm1277, %v1270, %v1274
        %v1279 = vand.u32 2147483647, %v687
        %vm1280 = vcmp.eq.f32.partialorder %v1279, 8.507059e+37
        %v1281 = vand.u32 %v687, 2147483648
        %v1282 = vor.u32 1.1754944e-38, %v1281
        %v1283 = vsel %vm1280, %v1282, %v1278
        %v1284 = vrcp.pop %v688
        %v1285 = vmul.f32 %v688, %v1284
        %v1286 = vsub.f32 1.0, %v1285
        %v1287 = vmul.f32 %v1284, %v1286
        %v1288 = vadd.f32 %v1284, %v1287
        %vm1289 = vweird.f32 %v688
        %vm1290 = vweird.f32 %v1284
        %vm1291 = vmor %vm1289, %vm1290
        %v1292 = vsel %vm1291, %v1284, %v1288
        %v1293 = vand.u32 2147483647, %v688
        %vm1294 = vcmp.eq.f32.partialorder %v1293, 8.507059e+37
        %v1295 = vand.u32 %v688, 2147483648
        %v1296 = vor.u32 1.1754944e-38, %v1295
        %v1297 = vsel %vm1294, %v1296, %v1292
        %v1298 = vrcp.pop %v689
        %v1299 = vmul.f32 %v689, %v1298
        %v1300 = vsub.f32 1.0, %v1299
        %v1301 = vmul.f32 %v1298, %v1300
        %v1302 = vadd.f32 %v1298, %v1301
        %vm1303 = vweird.f32 %v689
        %vm1304 = vweird.f32 %v1298
        %vm1305 = vmor %vm1303, %vm1304
        %v1306 = vsel %vm1305, %v1298, %v1302
        %v1307 = vand.u32 2147483647, %v689
        %vm1308 = vcmp.eq.f32.partialorder %v1307, 8.507059e+37
        %v1309 = vand.u32 %v689, 2147483648
        %v1310 = vor.u32 1.1754944e-38, %v1309
        %v1311 = vsel %vm1308, %v1310, %v1306
        %v1312 = vrcp.pop %v690
        %v1313 = vmul.f32 %v690, %v1312
        %v1314 = vsub.f32 1.0, %v1313
        %v1315 = vmul.f32 %v1312, %v1314
        %v1316 = vadd.f32 %v1312, %v1315
        %vm1317 = vweird.f32 %v690
        %vm1318 = vweird.f32 %v1312
        %vm1319 = vmor %vm1317, %vm1318
        %v1320 = vsel %vm1319, %v1312, %v1316
        %v1321 = vand.u32 2147483647, %v690
        %vm1322 = vcmp.eq.f32.partialorder %v1321, 8.507059e+37
        %v1323 = vand.u32 %v690, 2147483648
        %v1324 = vor.u32 1.1754944e-38, %v1323
        %v1325 = vsel %vm1322, %v1324, %v1320
        %v1326 = vrcp.pop %v691
        %v1327 = vmul.f32 %v691, %v1326
        %v1328 = vsub.f32 1.0, %v1327
        %v1329 = vmul.f32 %v1326, %v1328
        %v1330 = vadd.f32 %v1326, %v1329
        %vm1331 = vweird.f32 %v691
        %vm1332 = vweird.f32 %v1326
        %vm1333 = vmor %vm1331, %vm1332
        %v1334 = vsel %vm1333, %v1326, %v1330
        %v1335 = vand.u32 2147483647, %v691
        %vm1336 = vcmp.eq.f32.partialorder %v1335, 8.507059e+37
        %v1337 = vand.u32 %v691, 2147483648
        %v1338 = vor.u32 1.1754944e-38, %v1337
        %v1339 = vsel %vm1336, %v1338, %v1334
        %v1340 = vrcp.pop %v692
        %v1341 = vmul.f32 %v692, %v1340
        %v1342 = vsub.f32 1.0, %v1341
        %v1343 = vmul.f32 %v1340, %v1342
        %v1344 = vadd.f32 %v1340, %v1343
        %vm1345 = vweird.f32 %v692
        %vm1346 = vweird.f32 %v1340
        %vm1347 = vmor %vm1345, %vm1346
        %v1348 = vsel %vm1347, %v1340, %v1344
        %v1349 = vand.u32 2147483647, %v692
        %vm1350 = vcmp.eq.f32.partialorder %v1349, 8.507059e+37
        %v1351 = vand.u32 %v692, 2147483648
        %v1352 = vor.u32 1.1754944e-38, %v1351
        %v1353 = vsel %vm1350, %v1352, %v1348
        %v1354 = vrcp.pop %v693
        %v1355 = vmul.f32 %v693, %v1354
        %v1356 = vsub.f32 1.0, %v1355
        %v1357 = vmul.f32 %v1354, %v1356
        %v1358 = vadd.f32 %v1354, %v1357
        %vm1359 = vweird.f32 %v693
        %vm1360 = vweird.f32 %v1354
        %vm1361 = vmor %vm1359, %vm1360
        %v1362 = vsel %vm1361, %v1354, %v1358
        %v1363 = vand.u32 2147483647, %v693
        %vm1364 = vcmp.eq.f32.partialorder %v1363, 8.507059e+37
        %v1365 = vand.u32 %v693, 2147483648
        %v1366 = vor.u32 1.1754944e-38, %v1365
        %v1367 = vsel %vm1364, %v1366, %v1362
        %v1368 = vrcp.pop %v694
        %v1369 = vmul.f32 %v694, %v1368
        %v1370 = vsub.f32 1.0, %v1369
        %v1371 = vmul.f32 %v1368, %v1370
        %v1372 = vadd.f32 %v1368, %v1371
        %vm1373 = vweird.f32 %v694
        %vm1374 = vweird.f32 %v1368
        %vm1375 = vmor %vm1373, %vm1374
        %v1376 = vsel %vm1375, %v1368, %v1372
        %v1377 = vand.u32 2147483647, %v694
        %vm1378 = vcmp.eq.f32.partialorder %v1377, 8.507059e+37
        %v1379 = vand.u32 %v694, 2147483648
        %v1380 = vor.u32 1.1754944e-38, %v1379
        %v1381 = vsel %vm1378, %v1380, %v1376
        %v1382 = vrcp.pop %v695
        %v1383 = vmul.f32 %v695, %v1382
        %v1384 = vsub.f32 1.0, %v1383
        %v1385 = vmul.f32 %v1382, %v1384
        %v1386 = vadd.f32 %v1382, %v1385
        %vm1387 = vweird.f32 %v695
        %vm1388 = vweird.f32 %v1382
        %vm1389 = vmor %vm1387, %vm1388
        %v1390 = vsel %vm1389, %v1382, %v1386
        %v1391 = vand.u32 2147483647, %v695
        %vm1392 = vcmp.eq.f32.partialorder %v1391, 8.507059e+37
        %v1393 = vand.u32 %v695, 2147483648
        %v1394 = vor.u32 1.1754944e-38, %v1393
        %v1395 = vsel %vm1392, %v1394, %v1390
        %v1396 = vrcp.pop %v696
        %v1397 = vmul.f32 %v696, %v1396
        %v1398 = vsub.f32 1.0, %v1397
        %v1399 = vmul.f32 %v1396, %v1398
        %v1400 = vadd.f32 %v1396, %v1399
        %vm1401 = vweird.f32 %v696
        %vm1402 = vweird.f32 %v1396
        %vm1403 = vmor %vm1401, %vm1402
        %v1404 = vsel %vm1403, %v1396, %v1400
        %v1405 = vand.u32 2147483647, %v696
        %vm1406 = vcmp.eq.f32.partialorder %v1405, 8.507059e+37
        %v1407 = vand.u32 %v696, 2147483648
        %v1408 = vor.u32 1.1754944e-38, %v1407
        %v1409 = vsel %vm1406, %v1408, %v1404
        %v1410 = vrcp.pop %v697
        %v1411 = vmul.f32 %v697, %v1410
        %v1412 = vsub.f32 1.0, %v1411
        %v1413 = vmul.f32 %v1410, %v1412
        %v1414 = vadd.f32 %v1410, %v1413
        %vm1415 = vweird.f32 %v697
        %vm1416 = vweird.f32 %v1410
        %vm1417 = vmor %vm1415, %vm1416
        %v1418 = vsel %vm1417, %v1410, %v1414
        %v1419 = vand.u32 2147483647, %v697
        %vm1420 = vcmp.eq.f32.partialorder %v1419, 8.507059e+37
        %v1421 = vand.u32 %v697, 2147483648
        %v1422 = vor.u32 1.1754944e-38, %v1421
        %v1423 = vsel %vm1420, %v1422, %v1418
        %v1424 = vrcp.pop %v698
        %v1425 = vmul.f32 %v698, %v1424
        %v1426 = vsub.f32 1.0, %v1425
        %v1427 = vmul.f32 %v1424, %v1426
        %v1428 = vadd.f32 %v1424, %v1427
        %vm1429 = vweird.f32 %v698
        %vm1430 = vweird.f32 %v1424
        %vm1431 = vmor %vm1429, %vm1430
        %v1432 = vsel %vm1431, %v1424, %v1428
        %v1433 = vand.u32 2147483647, %v698
        %vm1434 = vcmp.eq.f32.partialorder %v1433, 8.507059e+37
        %v1435 = vand.u32 %v698, 2147483648
        %v1436 = vor.u32 1.1754944e-38, %v1435
        %v1437 = vsel %vm1434, %v1436, %v1432
        %v1438 = vrcp.pop %v699
        %v1439 = vmul.f32 %v699, %v1438
        %v1440 = vsub.f32 1.0, %v1439
        %v1441 = vmul.f32 %v1438, %v1440
        %v1442 = vadd.f32 %v1438, %v1441
        %vm1443 = vweird.f32 %v699
        %vm1444 = vweird.f32 %v1438
        %vm1445 = vmor %vm1443, %vm1444
        %v1446 = vsel %vm1445, %v1438, %v1442
        %v1447 = vand.u32 2147483647, %v699
        %vm1448 = vcmp.eq.f32.partialorder %v1447, 8.507059e+37
        %v1449 = vand.u32 %v699, 2147483648
        %v1450 = vor.u32 1.1754944e-38, %v1449
        %v1451 = vsel %vm1448, %v1450, %v1446
        %v1452 = vrcp.pop %v700
        %v1453 = vmul.f32 %v700, %v1452
        %v1454 = vsub.f32 1.0, %v1453
        %v1455 = vmul.f32 %v1452, %v1454
        %v1456 = vadd.f32 %v1452, %v1455
        %vm1457 = vweird.f32 %v700
        %vm1458 = vweird.f32 %v1452
        %vm1459 = vmor %vm1457, %vm1458
        %v1460 = vsel %vm1459, %v1452, %v1456
        %v1461 = vand.u32 2147483647, %v700
        %vm1462 = vcmp.eq.f32.partialorder %v1461, 8.507059e+37
        %v1463 = vand.u32 %v700, 2147483648
        %v1464 = vor.u32 1.1754944e-38, %v1463
        %v1465 = vsel %vm1462, %v1464, %v1460
        %v1466 = vrcp.pop %v701
        %v1467 = vmul.f32 %v701, %v1466
        %v1468 = vsub.f32 1.0, %v1467
        %v1469 = vmul.f32 %v1466, %v1468
        %v1470 = vadd.f32 %v1466, %v1469
        %vm1471 = vweird.f32 %v701
        %vm1472 = vweird.f32 %v1466
        %vm1473 = vmor %vm1471, %vm1472
        %v1474 = vsel %vm1473, %v1466, %v1470
        %v1475 = vand.u32 2147483647, %v701
        %vm1476 = vcmp.eq.f32.partialorder %v1475, 8.507059e+37
        %v1477 = vand.u32 %v701, 2147483648
        %v1478 = vor.u32 1.1754944e-38, %v1477
        %v1479 = vsel %vm1476, %v1478, %v1474
        %v1480 = vrcp.pop %v702
        %v1481 = vmul.f32 %v702, %v1480
        %v1482 = vsub.f32 1.0, %v1481
        %v1483 = vmul.f32 %v1480, %v1482
        %v1484 = vadd.f32 %v1480, %v1483
        %vm1485 = vweird.f32 %v702
        %vm1486 = vweird.f32 %v1480
        %vm1487 = vmor %vm1485, %vm1486
        %v1488 = vsel %vm1487, %v1480, %v1484
        %v1489 = vand.u32 2147483647, %v702
        %vm1490 = vcmp.eq.f32.partialorder %v1489, 8.507059e+37
        %v1491 = vand.u32 %v702, 2147483648
        %v1492 = vor.u32 1.1754944e-38, %v1491
        %v1493 = vsel %vm1490, %v1492, %v1488
        %v1494 = vrcp.pop %v703
        %v1495 = vmul.f32 %v703, %v1494
        %v1496 = vsub.f32 1.0, %v1495
        %v1497 = vmul.f32 %v1494, %v1496
        %v1498 = vadd.f32 %v1494, %v1497
        %vm1499 = vweird.f32 %v703
        %vm1500 = vweird.f32 %v1494
        %vm1501 = vmor %vm1499, %vm1500
        %v1502 = vsel %vm1501, %v1494, %v1498
        %v1503 = vand.u32 2147483647, %v703
        %vm1504 = vcmp.eq.f32.partialorder %v1503, 8.507059e+37
        %v1505 = vand.u32 %v703, 2147483648
        %v1506 = vor.u32 1.1754944e-38, %v1505
        %v1507 = vsel %vm1504, %v1506, %v1502
        %v1508 = vrcp.pop %v704
        %v1509 = vmul.f32 %v704, %v1508
        %v1510 = vsub.f32 1.0, %v1509
        %v1511 = vmul.f32 %v1508, %v1510
        %v1512 = vadd.f32 %v1508, %v1511
        %vm1513 = vweird.f32 %v704
        %vm1514 = vweird.f32 %v1508
        %vm1515 = vmor %vm1513, %vm1514
        %v1516 = vsel %vm1515, %v1508, %v1512
        %v1517 = vand.u32 2147483647, %v704
        %vm1518 = vcmp.eq.f32.partialorder %v1517, 8.507059e+37
        %v1519 = vand.u32 %v704, 2147483648
        %v1520 = vor.u32 1.1754944e-38, %v1519
        %v1521 = vsel %vm1518, %v1520, %v1516
        %v1522 = vrcp.pop %v705
        %v1523 = vmul.f32 %v705, %v1522
        %v1524 = vsub.f32 1.0, %v1523
        %v1525 = vmul.f32 %v1522, %v1524
        %v1526 = vadd.f32 %v1522, %v1525
        %vm1527 = vweird.f32 %v705
        %vm1528 = vweird.f32 %v1522
        %vm1529 = vmor %vm1527, %vm1528
        %v1530 = vsel %vm1529, %v1522, %v1526
        %v1531 = vand.u32 2147483647, %v705
        %vm1532 = vcmp.eq.f32.partialorder %v1531, 8.507059e+37
        %v1533 = vand.u32 %v705, 2147483648
        %v1534 = vor.u32 1.1754944e-38, %v1533
        %v1535 = vsel %vm1532, %v1534, %v1530
        %v1536 = vrcp.pop %v706
        %v1537 = vmul.f32 %v706, %v1536
        %v1538 = vsub.f32 1.0, %v1537
        %v1539 = vmul.f32 %v1536, %v1538
        %v1540 = vadd.f32 %v1536, %v1539
        %vm1541 = vweird.f32 %v706
        %vm1542 = vweird.f32 %v1536
        %vm1543 = vmor %vm1541, %vm1542
        %v1544 = vsel %vm1543, %v1536, %v1540
        %v1545 = vand.u32 2147483647, %v706
        %vm1546 = vcmp.eq.f32.partialorder %v1545, 8.507059e+37
        %v1547 = vand.u32 %v706, 2147483648
        %v1548 = vor.u32 1.1754944e-38, %v1547
        %v1549 = vsel %vm1546, %v1548, %v1544
        %v1550 = vrcp.pop %v707
        %v1551 = vmul.f32 %v707, %v1550
        %v1552 = vsub.f32 1.0, %v1551
        %v1553 = vmul.f32 %v1550, %v1552
        %v1554 = vadd.f32 %v1550, %v1553
        %vm1555 = vweird.f32 %v707
        %vm1556 = vweird.f32 %v1550
        %vm1557 = vmor %vm1555, %vm1556
        %v1558 = vsel %vm1557, %v1550, %v1554
        %v1559 = vand.u32 2147483647, %v707
        %vm1560 = vcmp.eq.f32.partialorder %v1559, 8.507059e+37
        %v1561 = vand.u32 %v707, 2147483648
        %v1562 = vor.u32 1.1754944e-38, %v1561
        %v1563 = vsel %vm1560, %v1562, %v1558
        %v1564 = vrcp.pop %v708
        %v1565 = vmul.f32 %v708, %v1564
        %v1566 = vsub.f32 1.0, %v1565
        %v1567 = vmul.f32 %v1564, %v1566
        %v1568 = vadd.f32 %v1564, %v1567
        %vm1569 = vweird.f32 %v708
        %vm1570 = vweird.f32 %v1564
        %vm1571 = vmor %vm1569, %vm1570
        %v1572 = vsel %vm1571, %v1564, %v1568
        %v1573 = vand.u32 2147483647, %v708
        %vm1574 = vcmp.eq.f32.partialorder %v1573, 8.507059e+37
        %v1575 = vand.u32 %v708, 2147483648
        %v1576 = vor.u32 1.1754944e-38, %v1575
        %v1577 = vsel %vm1574, %v1576, %v1572
        %v1578 = vrcp.pop %v709
        %v1579 = vmul.f32 %v709, %v1578
        %v1580 = vsub.f32 1.0, %v1579
        %v1581 = vmul.f32 %v1578, %v1580
        %v1582 = vadd.f32 %v1578, %v1581
        %vm1583 = vweird.f32 %v709
        %vm1584 = vweird.f32 %v1578
        %vm1585 = vmor %vm1583, %vm1584
        %v1586 = vsel %vm1585, %v1578, %v1582
        %v1587 = vand.u32 2147483647, %v709
        %vm1588 = vcmp.eq.f32.partialorder %v1587, 8.507059e+37
        %v1589 = vand.u32 %v709, 2147483648
        %v1590 = vor.u32 1.1754944e-38, %v1589
        %v1591 = vsel %vm1588, %v1590, %v1586
        %v1592 = vrcp.pop %v710
        %v1593 = vmul.f32 %v710, %v1592
        %v1594 = vsub.f32 1.0, %v1593
        %v1595 = vmul.f32 %v1592, %v1594
        %v1596 = vadd.f32 %v1592, %v1595
        %vm1597 = vweird.f32 %v710
        %vm1598 = vweird.f32 %v1592
        %vm1599 = vmor %vm1597, %vm1598
        %v1600 = vsel %vm1599, %v1592, %v1596
        %v1601 = vand.u32 2147483647, %v710
        %vm1602 = vcmp.eq.f32.partialorder %v1601, 8.507059e+37
        %v1603 = vand.u32 %v710, 2147483648
        %v1604 = vor.u32 1.1754944e-38, %v1603
        %v1605 = vsel %vm1602, %v1604, %v1600
        %v1606 = vrcp.pop %v711
        %v1607 = vmul.f32 %v711, %v1606
        %v1608 = vsub.f32 1.0, %v1607
        %v1609 = vmul.f32 %v1606, %v1608
        %v1610 = vadd.f32 %v1606, %v1609
        %vm1611 = vweird.f32 %v711
        %vm1612 = vweird.f32 %v1606
        %vm1613 = vmor %vm1611, %vm1612
        %v1614 = vsel %vm1613, %v1606, %v1610
        %v1615 = vand.u32 2147483647, %v711
        %vm1616 = vcmp.eq.f32.partialorder %v1615, 8.507059e+37
        %v1617 = vand.u32 %v711, 2147483648
        %v1618 = vor.u32 1.1754944e-38, %v1617
        %v1619 = vsel %vm1616, %v1618, %v1614
        %v1620 = vrcp.pop %v712
        %v1621 = vmul.f32 %v712, %v1620
        %v1622 = vsub.f32 1.0, %v1621
        %v1623 = vmul.f32 %v1620, %v1622
        %v1624 = vadd.f32 %v1620, %v1623
        %vm1625 = vweird.f32 %v712
        %vm1626 = vweird.f32 %v1620
        %vm1627 = vmor %vm1625, %vm1626
        %v1628 = vsel %vm1627, %v1620, %v1624
        %v1629 = vand.u32 2147483647, %v712
        %vm1630 = vcmp.eq.f32.partialorder %v1629, 8.507059e+37
        %v1631 = vand.u32 %v712, 2147483648
        %v1632 = vor.u32 1.1754944e-38, %v1631
        %v1633 = vsel %vm1630, %v1632, %v1628
        %v1634 = vrcp.pop %v713
        %v1635 = vmul.f32 %v713, %v1634
        %v1636 = vsub.f32 1.0, %v1635
        %v1637 = vmul.f32 %v1634, %v1636
        %v1638 = vadd.f32 %v1634, %v1637
        %vm1639 = vweird.f32 %v713
        %vm1640 = vweird.f32 %v1634
        %vm1641 = vmor %vm1639, %vm1640
        %v1642 = vsel %vm1641, %v1634, %v1638
        %v1643 = vand.u32 2147483647, %v713
        %vm1644 = vcmp.eq.f32.partialorder %v1643, 8.507059e+37
        %v1645 = vand.u32 %v713, 2147483648
        %v1646 = vor.u32 1.1754944e-38, %v1645
        %v1647 = vsel %vm1644, %v1646, %v1642
        %v1648 = vrcp.pop %v714
        %v1649 = vmul.f32 %v714, %v1648
        %v1650 = vsub.f32 1.0, %v1649
        %v1651 = vmul.f32 %v1648, %v1650
        %v1652 = vadd.f32 %v1648, %v1651
        %vm1653 = vweird.f32 %v714
        %vm1654 = vweird.f32 %v1648
        %vm1655 = vmor %vm1653, %vm1654
        %v1656 = vsel %vm1655, %v1648, %v1652
        %v1657 = vand.u32 2147483647, %v714
        %vm1658 = vcmp.eq.f32.partialorder %v1657, 8.507059e+37
        %v1659 = vand.u32 %v714, 2147483648
        %v1660 = vor.u32 1.1754944e-38, %v1659
        %v1661 = vsel %vm1658, %v1660, %v1656
        %v1662 = vrcp.pop %v715
        %v1663 = vmul.f32 %v715, %v1662
        %v1664 = vsub.f32 1.0, %v1663
        %v1665 = vmul.f32 %v1662, %v1664
        %v1666 = vadd.f32 %v1662, %v1665
        %vm1667 = vweird.f32 %v715
        %vm1668 = vweird.f32 %v1662
        %vm1669 = vmor %vm1667, %vm1668
        %v1670 = vsel %vm1669, %v1662, %v1666
        %v1671 = vand.u32 2147483647, %v715
        %vm1672 = vcmp.eq.f32.partialorder %v1671, 8.507059e+37
        %v1673 = vand.u32 %v715, 2147483648
        %v1674 = vor.u32 1.1754944e-38, %v1673
        %v1675 = vsel %vm1672, %v1674, %v1670
        %v1676 = vrcp.pop %v716
        %v1677 = vmul.f32 %v716, %v1676
        %v1678 = vsub.f32 1.0, %v1677
        %v1679 = vmul.f32 %v1676, %v1678
        %v1680 = vadd.f32 %v1676, %v1679
        %vm1681 = vweird.f32 %v716
        %vm1682 = vweird.f32 %v1676
        %vm1683 = vmor %vm1681, %vm1682
        %v1684 = vsel %vm1683, %v1676, %v1680
        %v1685 = vand.u32 2147483647, %v716
        %vm1686 = vcmp.eq.f32.partialorder %v1685, 8.507059e+37
        %v1687 = vand.u32 %v716, 2147483648
        %v1688 = vor.u32 1.1754944e-38, %v1687
        %v1689 = vsel %vm1686, %v1688, %v1684
        %v1690 = vrcp.pop %v717
        %v1691 = vmul.f32 %v717, %v1690
        %v1692 = vsub.f32 1.0, %v1691
        %v1693 = vmul.f32 %v1690, %v1692
        %v1694 = vadd.f32 %v1690, %v1693
        %vm1695 = vweird.f32 %v717
        %vm1696 = vweird.f32 %v1690
        %vm1697 = vmor %vm1695, %vm1696
        %v1698 = vsel %vm1697, %v1690, %v1694
        %v1699 = vand.u32 2147483647, %v717
        %vm1700 = vcmp.eq.f32.partialorder %v1699, 8.507059e+37
        %v1701 = vand.u32 %v717, 2147483648
        %v1702 = vor.u32 1.1754944e-38, %v1701
        %v1703 = vsel %vm1700, %v1702, %v1698
        %v1704 = vrcp.pop %v718
        %v1705 = vmul.f32 %v718, %v1704
        %v1706 = vsub.f32 1.0, %v1705
        %v1707 = vmul.f32 %v1704, %v1706
        %v1708 = vadd.f32 %v1704, %v1707
        %vm1709 = vweird.f32 %v718
        %vm1710 = vweird.f32 %v1704
        %vm1711 = vmor %vm1709, %vm1710
        %v1712 = vsel %vm1711, %v1704, %v1708
        %v1713 = vand.u32 2147483647, %v718
        %vm1714 = vcmp.eq.f32.partialorder %v1713, 8.507059e+37
        %v1715 = vand.u32 %v718, 2147483648
        %v1716 = vor.u32 1.1754944e-38, %v1715
        %v1717 = vsel %vm1714, %v1716, %v1712
        %v1718 = vrcp.pop %v719
        %v1719 = vmul.f32 %v719, %v1718
        %v1720 = vsub.f32 1.0, %v1719
        %v1721 = vmul.f32 %v1718, %v1720
        %v1722 = vadd.f32 %v1718, %v1721
        %vm1723 = vweird.f32 %v719
        %vm1724 = vweird.f32 %v1718
        %vm1725 = vmor %vm1723, %vm1724
        %v1726 = vsel %vm1725, %v1718, %v1722
        %v1727 = vand.u32 2147483647, %v719
        %vm1728 = vcmp.eq.f32.partialorder %v1727, 8.507059e+37
        %v1729 = vand.u32 %v719, 2147483648
        %v1730 = vor.u32 1.1754944e-38, %v1729
        %v1731 = vsel %vm1728, %v1730, %v1726
        %v1732 = vrcp.pop %v720
        %v1733 = vmul.f32 %v720, %v1732
        %v1734 = vsub.f32 1.0, %v1733
        %v1735 = vmul.f32 %v1732, %v1734
        %v1736 = vadd.f32 %v1732, %v1735
        %vm1737 = vweird.f32 %v720
        %vm1738 = vweird.f32 %v1732
        %vm1739 = vmor %vm1737, %vm1738
        %v1740 = vsel %vm1739, %v1732, %v1736
        %v1741 = vand.u32 2147483647, %v720
        %vm1742 = vcmp.eq.f32.partialorder %v1741, 8.507059e+37
        %v1743 = vand.u32 %v720, 2147483648
        %v1744 = vor.u32 1.1754944e-38, %v1743
        %v1745 = vsel %vm1742, %v1744, %v1740
        %v1746 = vrcp.pop %v721
        %v1747 = vmul.f32 %v721, %v1746
        %v1748 = vsub.f32 1.0, %v1747
        %v1749 = vmul.f32 %v1746, %v1748
        %v1750 = vadd.f32 %v1746, %v1749
        %vm1751 = vweird.f32 %v721
        %vm1752 = vweird.f32 %v1746
        %vm1753 = vmor %vm1751, %vm1752
        %v1754 = vsel %vm1753, %v1746, %v1750
        %v1755 = vand.u32 2147483647, %v721
        %vm1756 = vcmp.eq.f32.partialorder %v1755, 8.507059e+37
        %v1757 = vand.u32 %v721, 2147483648
        %v1758 = vor.u32 1.1754944e-38, %v1757
        %v1759 = vsel %vm1756, %v1758, %v1754
        %v1760 = vrcp.pop %v722
        %v1761 = vmul.f32 %v722, %v1760
        %v1762 = vsub.f32 1.0, %v1761
        %v1763 = vmul.f32 %v1760, %v1762
        %v1764 = vadd.f32 %v1760, %v1763
        %vm1765 = vweird.f32 %v722
        %vm1766 = vweird.f32 %v1760
        %vm1767 = vmor %vm1765, %vm1766
        %v1768 = vsel %vm1767, %v1760, %v1764
        %v1769 = vand.u32 2147483647, %v722
        %vm1770 = vcmp.eq.f32.partialorder %v1769, 8.507059e+37
        %v1771 = vand.u32 %v722, 2147483648
        %v1772 = vor.u32 1.1754944e-38, %v1771
        %v1773 = vsel %vm1770, %v1772, %v1768
        %v1774 = vrcp.pop %v723
        %v1775 = vmul.f32 %v723, %v1774
        %v1776 = vsub.f32 1.0, %v1775
        %v1777 = vmul.f32 %v1774, %v1776
        %v1778 = vadd.f32 %v1774, %v1777
        %vm1779 = vweird.f32 %v723
        %vm1780 = vweird.f32 %v1774
        %vm1781 = vmor %vm1779, %vm1780
        %v1782 = vsel %vm1781, %v1774, %v1778
        %v1783 = vand.u32 2147483647, %v723
        %vm1784 = vcmp.eq.f32.partialorder %v1783, 8.507059e+37
        %v1785 = vand.u32 %v723, 2147483648
        %v1786 = vor.u32 1.1754944e-38, %v1785
        %v1787 = vsel %vm1784, %v1786, %v1782
        %v1788 = vrcp.pop %v724
        %v1789 = vmul.f32 %v724, %v1788
        %v1790 = vsub.f32 1.0, %v1789
        %v1791 = vmul.f32 %v1788, %v1790
        %v1792 = vadd.f32 %v1788, %v1791
        %vm1793 = vweird.f32 %v724
        %vm1794 = vweird.f32 %v1788
        %vm1795 = vmor %vm1793, %vm1794
        %v1796 = vsel %vm1795, %v1788, %v1792
        %v1797 = vand.u32 2147483647, %v724
        %vm1798 = vcmp.eq.f32.partialorder %v1797, 8.507059e+37
        %v1799 = vand.u32 %v724, 2147483648
        %v1800 = vor.u32 1.1754944e-38, %v1799
        %v1801 = vsel %vm1798, %v1800, %v1796
        %v1802 = vrcp.pop %v725
        %v1803 = vmul.f32 %v725, %v1802
        %v1804 = vsub.f32 1.0, %v1803
        %v1805 = vmul.f32 %v1802, %v1804
        %v1806 = vadd.f32 %v1802, %v1805
        %vm1807 = vweird.f32 %v725
        %vm1808 = vweird.f32 %v1802
        %vm1809 = vmor %vm1807, %vm1808
        %v1810 = vsel %vm1809, %v1802, %v1806
        %v1811 = vand.u32 2147483647, %v725
        %vm1812 = vcmp.eq.f32.partialorder %v1811, 8.507059e+37
        %v1813 = vand.u32 %v725, 2147483648
        %v1814 = vor.u32 1.1754944e-38, %v1813
        %v1815 = vsel %vm1812, %v1814, %v1810
        %v1816 = vrcp.pop %v726
        %v1817 = vmul.f32 %v726, %v1816
        %v1818 = vsub.f32 1.0, %v1817
        %v1819 = vmul.f32 %v1816, %v1818
        %v1820 = vadd.f32 %v1816, %v1819
        %vm1821 = vweird.f32 %v726
        %vm1822 = vweird.f32 %v1816
        %vm1823 = vmor %vm1821, %vm1822
        %v1824 = vsel %vm1823, %v1816, %v1820
        %v1825 = vand.u32 2147483647, %v726
        %vm1826 = vcmp.eq.f32.partialorder %v1825, 8.507059e+37
        %v1827 = vand.u32 %v726, 2147483648
        %v1828 = vor.u32 1.1754944e-38, %v1827
        %v1829 = vsel %vm1826, %v1828, %v1824
        %v1830 = vrcp.pop %v727
        %v1831 = vmul.f32 %v727, %v1830
        %v1832 = vsub.f32 1.0, %v1831
        %v1833 = vmul.f32 %v1830, %v1832
        %v1834 = vadd.f32 %v1830, %v1833
        %vm1835 = vweird.f32 %v727
        %vm1836 = vweird.f32 %v1830
        %vm1837 = vmor %vm1835, %vm1836
        %v1838 = vsel %vm1837, %v1830, %v1834
        %v1839 = vand.u32 2147483647, %v727
        %vm1840 = vcmp.eq.f32.partialorder %v1839, 8.507059e+37
        %v1841 = vand.u32 %v727, 2147483648
        %v1842 = vor.u32 1.1754944e-38, %v1841
        %v1843 = vsel %vm1840, %v1842, %v1838
        %v1844 = vrcp.pop %v728
        %v1845 = vmul.f32 %v728, %v1844
        %v1846 = vsub.f32 1.0, %v1845
        %v1847 = vmul.f32 %v1844, %v1846
        %v1848 = vadd.f32 %v1844, %v1847
        %vm1849 = vweird.f32 %v728
        %vm1850 = vweird.f32 %v1844
        %vm1851 = vmor %vm1849, %vm1850
        %v1852 = vsel %vm1851, %v1844, %v1848
        %v1853 = vand.u32 2147483647, %v728
        %vm1854 = vcmp.eq.f32.partialorder %v1853, 8.507059e+37
        %v1855 = vand.u32 %v728, 2147483648
        %v1856 = vor.u32 1.1754944e-38, %v1855
        %v1857 = vsel %vm1854, %v1856, %v1852
        %v1858 = vrcp.pop %v729
        %v1859 = vmul.f32 %v729, %v1858
        %v1860 = vsub.f32 1.0, %v1859
        %v1861 = vmul.f32 %v1858, %v1860
        %v1862 = vadd.f32 %v1858, %v1861
        %vm1863 = vweird.f32 %v729
        %vm1864 = vweird.f32 %v1858
        %vm1865 = vmor %vm1863, %vm1864
        %v1866 = vsel %vm1865, %v1858, %v1862
        %v1867 = vand.u32 2147483647, %v729
        %vm1868 = vcmp.eq.f32.partialorder %v1867, 8.507059e+37
        %v1869 = vand.u32 %v729, 2147483648
        %v1870 = vor.u32 1.1754944e-38, %v1869
        %v1871 = vsel %vm1868, %v1870, %v1866
        %v1872 = vrcp.pop %v730
        %v1873 = vmul.f32 %v730, %v1872
        %v1874 = vsub.f32 1.0, %v1873
        %v1875 = vmul.f32 %v1872, %v1874
        %v1876 = vadd.f32 %v1872, %v1875
        %vm1877 = vweird.f32 %v730
        %vm1878 = vweird.f32 %v1872
        %vm1879 = vmor %vm1877, %vm1878
        %v1880 = vsel %vm1879, %v1872, %v1876
        %v1881 = vand.u32 2147483647, %v730
        %vm1882 = vcmp.eq.f32.partialorder %v1881, 8.507059e+37
        %v1883 = vand.u32 %v730, 2147483648
        %v1884 = vor.u32 1.1754944e-38, %v1883
        %v1885 = vsel %vm1882, %v1884, %v1880
        %v1886 = vrcp.pop %v731
        %v1887 = vmul.f32 %v731, %v1886
        %v1888 = vsub.f32 1.0, %v1887
        %v1889 = vmul.f32 %v1886, %v1888
        %v1890 = vadd.f32 %v1886, %v1889
        %vm1891 = vweird.f32 %v731
        %vm1892 = vweird.f32 %v1886
        %vm1893 = vmor %vm1891, %vm1892
        %v1894 = vsel %vm1893, %v1886, %v1890
        %v1895 = vand.u32 2147483647, %v731
        %vm1896 = vcmp.eq.f32.partialorder %v1895, 8.507059e+37
        %v1897 = vand.u32 %v731, 2147483648
        %v1898 = vor.u32 1.1754944e-38, %v1897
        %v1899 = vsel %vm1896, %v1898, %v1894
        %v1900 = vrcp.pop %v732
        %v1901 = vmul.f32 %v732, %v1900
        %v1902 = vsub.f32 1.0, %v1901
        %v1903 = vmul.f32 %v1900, %v1902
        %v1904 = vadd.f32 %v1900, %v1903
        %vm1905 = vweird.f32 %v732
        %vm1906 = vweird.f32 %v1900
        %vm1907 = vmor %vm1905, %vm1906
        %v1908 = vsel %vm1907, %v1900, %v1904
        %v1909 = vand.u32 2147483647, %v732
        %vm1910 = vcmp.eq.f32.partialorder %v1909, 8.507059e+37
        %v1911 = vand.u32 %v732, 2147483648
        %v1912 = vor.u32 1.1754944e-38, %v1911
        %v1913 = vsel %vm1910, %v1912, %v1908
        %v1914 = vrcp.pop %v733
        %v1915 = vmul.f32 %v733, %v1914
        %v1916 = vsub.f32 1.0, %v1915
        %v1917 = vmul.f32 %v1914, %v1916
        %v1918 = vadd.f32 %v1914, %v1917
        %vm1919 = vweird.f32 %v733
        %vm1920 = vweird.f32 %v1914
        %vm1921 = vmor %vm1919, %vm1920
        %v1922 = vsel %vm1921, %v1914, %v1918
        %v1923 = vand.u32 2147483647, %v733
        %vm1924 = vcmp.eq.f32.partialorder %v1923, 8.507059e+37
        %v1925 = vand.u32 %v733, 2147483648
        %v1926 = vor.u32 1.1754944e-38, %v1925
        %v1927 = vsel %vm1924, %v1926, %v1922
        %v1928 = vrcp.pop %v734
        %v1929 = vmul.f32 %v734, %v1928
        %v1930 = vsub.f32 1.0, %v1929
        %v1931 = vmul.f32 %v1928, %v1930
        %v1932 = vadd.f32 %v1928, %v1931
        %vm1933 = vweird.f32 %v734
        %vm1934 = vweird.f32 %v1928
        %vm1935 = vmor %vm1933, %vm1934
        %v1936 = vsel %vm1935, %v1928, %v1932
        %v1937 = vand.u32 2147483647, %v734
        %vm1938 = vcmp.eq.f32.partialorder %v1937, 8.507059e+37
        %v1939 = vand.u32 %v734, 2147483648
        %v1940 = vor.u32 1.1754944e-38, %v1939
        %v1941 = vsel %vm1938, %v1940, %v1936
        %v1942 = vrcp.pop %v735
        %v1943 = vmul.f32 %v735, %v1942
        %v1944 = vsub.f32 1.0, %v1943
        %v1945 = vmul.f32 %v1942, %v1944
        %v1946 = vadd.f32 %v1942, %v1945
        %vm1947 = vweird.f32 %v735
        %vm1948 = vweird.f32 %v1942
        %vm1949 = vmor %vm1947, %vm1948
        %v1950 = vsel %vm1949, %v1942, %v1946
        %v1951 = vand.u32 2147483647, %v735
        %vm1952 = vcmp.eq.f32.partialorder %v1951, 8.507059e+37
        %v1953 = vand.u32 %v735, 2147483648
        %v1954 = vor.u32 1.1754944e-38, %v1953
        %v1955 = vsel %vm1952, %v1954, %v1950
        %v1956 = vrcp.pop %v736
        %v1957 = vmul.f32 %v736, %v1956
        %v1958 = vsub.f32 1.0, %v1957
        %v1959 = vmul.f32 %v1956, %v1958
        %v1960 = vadd.f32 %v1956, %v1959
        %vm1961 = vweird.f32 %v736
        %vm1962 = vweird.f32 %v1956
        %vm1963 = vmor %vm1961, %vm1962
        %v1964 = vsel %vm1963, %v1956, %v1960
        %v1965 = vand.u32 2147483647, %v736
        %vm1966 = vcmp.eq.f32.partialorder %v1965, 8.507059e+37
        %v1967 = vand.u32 %v736, 2147483648
        %v1968 = vor.u32 1.1754944e-38, %v1967
        %v1969 = vsel %vm1966, %v1968, %v1964
        %v1970 = vrcp.pop %v737
        %v1971 = vmul.f32 %v737, %v1970
        %v1972 = vsub.f32 1.0, %v1971
        %v1973 = vmul.f32 %v1970, %v1972
        %v1974 = vadd.f32 %v1970, %v1973
        %vm1975 = vweird.f32 %v737
        %vm1976 = vweird.f32 %v1970
        %vm1977 = vmor %vm1975, %vm1976
        %v1978 = vsel %vm1977, %v1970, %v1974
        %v1979 = vand.u32 2147483647, %v737
        %vm1980 = vcmp.eq.f32.partialorder %v1979, 8.507059e+37
        %v1981 = vand.u32 %v737, 2147483648
        %v1982 = vor.u32 1.1754944e-38, %v1981
        %v1983 = vsel %vm1980, %v1982, %v1978
        %v1984 = vrcp.pop %v738
        %v1985 = vmul.f32 %v738, %v1984
        %v1986 = vsub.f32 1.0, %v1985
        %v1987 = vmul.f32 %v1984, %v1986
        %v1988 = vadd.f32 %v1984, %v1987
        %vm1989 = vweird.f32 %v738
        %vm1990 = vweird.f32 %v1984
        %vm1991 = vmor %vm1989, %vm1990
        %v1992 = vsel %vm1991, %v1984, %v1988
        %v1993 = vand.u32 2147483647, %v738
        %vm1994 = vcmp.eq.f32.partialorder %v1993, 8.507059e+37
        %v1995 = vand.u32 %v738, 2147483648
        %v1996 = vor.u32 1.1754944e-38, %v1995
        %v1997 = vsel %vm1994, %v1996, %v1992
        %v1998 = vrcp.pop %v739
        %v1999 = vmul.f32 %v739, %v1998
        %v2000 = vsub.f32 1.0, %v1999
        %v2001 = vmul.f32 %v1998, %v2000
        %v2002 = vadd.f32 %v1998, %v2001
        %vm2003 = vweird.f32 %v739
        %vm2004 = vweird.f32 %v1998
        %vm2005 = vmor %vm2003, %vm2004
        %v2006 = vsel %vm2005, %v1998, %v2002
        %v2007 = vand.u32 2147483647, %v739
        %vm2008 = vcmp.eq.f32.partialorder %v2007, 8.507059e+37
        %v2009 = vand.u32 %v739, 2147483648
        %v2010 = vor.u32 1.1754944e-38, %v2009
        %v2011 = vsel %vm2008, %v2010, %v2006
        %v2012 = vrcp.pop %v740
        %v2013 = vmul.f32 %v740, %v2012
        %v2014 = vsub.f32 1.0, %v2013
        %v2015 = vmul.f32 %v2012, %v2014
        %v2016 = vadd.f32 %v2012, %v2015
        %vm2017 = vweird.f32 %v740
        %vm2018 = vweird.f32 %v2012
        %vm2019 = vmor %vm2017, %vm2018
        %v2020 = vsel %vm2019, %v2012, %v2016
        %v2021 = vand.u32 2147483647, %v740
        %vm2022 = vcmp.eq.f32.partialorder %v2021, 8.507059e+37
        %v2023 = vand.u32 %v740, 2147483648
        %v2024 = vor.u32 1.1754944e-38, %v2023
        %v2025 = vsel %vm2022, %v2024, %v2020
        %v2026 = vrcp.pop %v741
        %v2027 = vmul.f32 %v741, %v2026
        %v2028 = vsub.f32 1.0, %v2027
        %v2029 = vmul.f32 %v2026, %v2028
        %v2030 = vadd.f32 %v2026, %v2029
        %vm2031 = vweird.f32 %v741
        %vm2032 = vweird.f32 %v2026
        %vm2033 = vmor %vm2031, %vm2032
        %v2034 = vsel %vm2033, %v2026, %v2030
        %v2035 = vand.u32 2147483647, %v741
        %vm2036 = vcmp.eq.f32.partialorder %v2035, 8.507059e+37
        %v2037 = vand.u32 %v741, 2147483648
        %v2038 = vor.u32 1.1754944e-38, %v2037
        %v2039 = vsel %vm2036, %v2038, %v2034
        %v2040 = vrcp.pop %v742
        %v2041 = vmul.f32 %v742, %v2040
        %v2042 = vsub.f32 1.0, %v2041
        %v2043 = vmul.f32 %v2040, %v2042
        %v2044 = vadd.f32 %v2040, %v2043
        %vm2045 = vweird.f32 %v742
        %vm2046 = vweird.f32 %v2040
        %vm2047 = vmor %vm2045, %vm2046
        %v2048 = vsel %vm2047, %v2040, %v2044
        %v2049 = vand.u32 2147483647, %v742
        %vm2050 = vcmp.eq.f32.partialorder %v2049, 8.507059e+37
        %v2051 = vand.u32 %v742, 2147483648
        %v2052 = vor.u32 1.1754944e-38, %v2051
        %v2053 = vsel %vm2050, %v2052, %v2048
        %v2054 = vrcp.pop %v743
        %v2055 = vmul.f32 %v743, %v2054
        %v2056 = vsub.f32 1.0, %v2055
        %v2057 = vmul.f32 %v2054, %v2056
        %v2058 = vadd.f32 %v2054, %v2057
        %vm2059 = vweird.f32 %v743
        %vm2060 = vweird.f32 %v2054
        %vm2061 = vmor %vm2059, %vm2060
        %v2062 = vsel %vm2061, %v2054, %v2058
        %v2063 = vand.u32 2147483647, %v743
        %vm2064 = vcmp.eq.f32.partialorder %v2063, 8.507059e+37
        %v2065 = vand.u32 %v743, 2147483648
        %v2066 = vor.u32 1.1754944e-38, %v2065
        %v2067 = vsel %vm2064, %v2066, %v2062
        %v2068 = vrcp.pop %v744
        %v2069 = vmul.f32 %v744, %v2068
        %v2070 = vsub.f32 1.0, %v2069
        %v2071 = vmul.f32 %v2068, %v2070
        %v2072 = vadd.f32 %v2068, %v2071
        %vm2073 = vweird.f32 %v744
        %vm2074 = vweird.f32 %v2068
        %vm2075 = vmor %vm2073, %vm2074
        %v2076 = vsel %vm2075, %v2068, %v2072
        %v2077 = vand.u32 2147483647, %v744
        %vm2078 = vcmp.eq.f32.partialorder %v2077, 8.507059e+37
        %v2079 = vand.u32 %v744, 2147483648
        %v2080 = vor.u32 1.1754944e-38, %v2079
        %v2081 = vsel %vm2078, %v2080, %v2076
        %v2082 = vrcp.pop %v745
        %v2083 = vmul.f32 %v745, %v2082
        %v2084 = vsub.f32 1.0, %v2083
        %v2085 = vmul.f32 %v2082, %v2084
        %v2086 = vadd.f32 %v2082, %v2085
        %vm2087 = vweird.f32 %v745
        %vm2088 = vweird.f32 %v2082
        %vm2089 = vmor %vm2087, %vm2088
        %v2090 = vsel %vm2089, %v2082, %v2086
        %v2091 = vand.u32 2147483647, %v745
        %vm2092 = vcmp.eq.f32.partialorder %v2091, 8.507059e+37
        %v2093 = vand.u32 %v745, 2147483648
        %v2094 = vor.u32 1.1754944e-38, %v2093
        %v2095 = vsel %vm2092, %v2094, %v2090
        %v2096 = vrcp.pop %v746
        %v2097 = vmul.f32 %v746, %v2096
        %v2098 = vsub.f32 1.0, %v2097
        %v2099 = vmul.f32 %v2096, %v2098
        %v2100 = vadd.f32 %v2096, %v2099
        %vm2101 = vweird.f32 %v746
        %vm2102 = vweird.f32 %v2096
        %vm2103 = vmor %vm2101, %vm2102
        %v2104 = vsel %vm2103, %v2096, %v2100
        %v2105 = vand.u32 2147483647, %v746
        %vm2106 = vcmp.eq.f32.partialorder %v2105, 8.507059e+37
        %v2107 = vand.u32 %v746, 2147483648
        %v2108 = vor.u32 1.1754944e-38, %v2107
        %v2109 = vsel %vm2106, %v2108, %v2104
        %v2110 = vrcp.pop %v747
        %v2111 = vmul.f32 %v747, %v2110
        %v2112 = vsub.f32 1.0, %v2111
        %v2113 = vmul.f32 %v2110, %v2112
        %v2114 = vadd.f32 %v2110, %v2113
        %vm2115 = vweird.f32 %v747
        %vm2116 = vweird.f32 %v2110
        %vm2117 = vmor %vm2115, %vm2116
        %v2118 = vsel %vm2117, %v2110, %v2114
        %v2119 = vand.u32 2147483647, %v747
        %vm2120 = vcmp.eq.f32.partialorder %v2119, 8.507059e+37
        %v2121 = vand.u32 %v747, 2147483648
        %v2122 = vor.u32 1.1754944e-38, %v2121
        %v2123 = vsel %vm2120, %v2122, %v2118
        %v2124 = vrcp.pop %v748
        %v2125 = vmul.f32 %v748, %v2124
        %v2126 = vsub.f32 1.0, %v2125
        %v2127 = vmul.f32 %v2124, %v2126
        %v2128 = vadd.f32 %v2124, %v2127
        %vm2129 = vweird.f32 %v748
        %vm2130 = vweird.f32 %v2124
        %vm2131 = vmor %vm2129, %vm2130
        %v2132 = vsel %vm2131, %v2124, %v2128
        %v2133 = vand.u32 2147483647, %v748
        %vm2134 = vcmp.eq.f32.partialorder %v2133, 8.507059e+37
        %v2135 = vand.u32 %v748, 2147483648
        %v2136 = vor.u32 1.1754944e-38, %v2135
        %v2137 = vsel %vm2134, %v2136, %v2132
        %v2138 = vrcp.pop %v749
        %v2139 = vmul.f32 %v749, %v2138
        %v2140 = vsub.f32 1.0, %v2139
        %v2141 = vmul.f32 %v2138, %v2140
        %v2142 = vadd.f32 %v2138, %v2141
        %vm2143 = vweird.f32 %v749
        %vm2144 = vweird.f32 %v2138
        %vm2145 = vmor %vm2143, %vm2144
        %v2146 = vsel %vm2145, %v2138, %v2142
        %v2147 = vand.u32 2147483647, %v749
        %vm2148 = vcmp.eq.f32.partialorder %v2147, 8.507059e+37
        %v2149 = vand.u32 %v749, 2147483648
        %v2150 = vor.u32 1.1754944e-38, %v2149
        %v2151 = vsel %vm2148, %v2150, %v2146
        %v2152 = vrcp.pop %v750
        %v2153 = vmul.f32 %v750, %v2152
        %v2154 = vsub.f32 1.0, %v2153
        %v2155 = vmul.f32 %v2152, %v2154
        %v2156 = vadd.f32 %v2152, %v2155
        %vm2157 = vweird.f32 %v750
        %vm2158 = vweird.f32 %v2152
        %vm2159 = vmor %vm2157, %vm2158
        %v2160 = vsel %vm2159, %v2152, %v2156
        %v2161 = vand.u32 2147483647, %v750
        %vm2162 = vcmp.eq.f32.partialorder %v2161, 8.507059e+37
        %v2163 = vand.u32 %v750, 2147483648
        %v2164 = vor.u32 1.1754944e-38, %v2163
        %v2165 = vsel %vm2162, %v2164, %v2160
        %v2166 = vrcp.pop %v751
        %v2167 = vmul.f32 %v751, %v2166
        %v2168 = vsub.f32 1.0, %v2167
        %v2169 = vmul.f32 %v2166, %v2168
        %v2170 = vadd.f32 %v2166, %v2169
        %vm2171 = vweird.f32 %v751
        %vm2172 = vweird.f32 %v2166
        %vm2173 = vmor %vm2171, %vm2172
        %v2174 = vsel %vm2173, %v2166, %v2170
        %v2175 = vand.u32 2147483647, %v751
        %vm2176 = vcmp.eq.f32.partialorder %v2175, 8.507059e+37
        %v2177 = vand.u32 %v751, 2147483648
        %v2178 = vor.u32 1.1754944e-38, %v2177
        %v2179 = vsel %vm2176, %v2178, %v2174
        %v2180 = vrcp.pop %v752
        %v2181 = vmul.f32 %v752, %v2180
        %v2182 = vsub.f32 1.0, %v2181
        %v2183 = vmul.f32 %v2180, %v2182
        %v2184 = vadd.f32 %v2180, %v2183
        %vm2185 = vweird.f32 %v752
        %vm2186 = vweird.f32 %v2180
        %vm2187 = vmor %vm2185, %vm2186
        %v2188 = vsel %vm2187, %v2180, %v2184
        %v2189 = vand.u32 2147483647, %v752
        %vm2190 = vcmp.eq.f32.partialorder %v2189, 8.507059e+37
        %v2191 = vand.u32 %v752, 2147483648
        %v2192 = vor.u32 1.1754944e-38, %v2191
        %v2193 = vsel %vm2190, %v2192, %v2188
        %v2194 = vrcp.pop %v753
        %v2195 = vmul.f32 %v753, %v2194
        %v2196 = vsub.f32 1.0, %v2195
        %v2197 = vmul.f32 %v2194, %v2196
        %v2198 = vadd.f32 %v2194, %v2197
        %vm2199 = vweird.f32 %v753
        %vm2200 = vweird.f32 %v2194
        %vm2201 = vmor %vm2199, %vm2200
        %v2202 = vsel %vm2201, %v2194, %v2198
        %v2203 = vand.u32 2147483647, %v753
        %vm2204 = vcmp.eq.f32.partialorder %v2203, 8.507059e+37
        %v2205 = vand.u32 %v753, 2147483648
        %v2206 = vor.u32 1.1754944e-38, %v2205
        %v2207 = vsel %vm2204, %v2206, %v2202
        %v2208 = vrcp.pop %v754
        %v2209 = vmul.f32 %v754, %v2208
        %v2210 = vsub.f32 1.0, %v2209
        %v2211 = vmul.f32 %v2208, %v2210
        %v2212 = vadd.f32 %v2208, %v2211
        %vm2213 = vweird.f32 %v754
        %vm2214 = vweird.f32 %v2208
        %vm2215 = vmor %vm2213, %vm2214
        %v2216 = vsel %vm2215, %v2208, %v2212
        %v2217 = vand.u32 2147483647, %v754
        %vm2218 = vcmp.eq.f32.partialorder %v2217, 8.507059e+37
        %v2219 = vand.u32 %v754, 2147483648
        %v2220 = vor.u32 1.1754944e-38, %v2219
        %v2221 = vsel %vm2218, %v2220, %v2216
        %v2222 = vrcp.pop %v755
        %v2223 = vmul.f32 %v755, %v2222
        %v2224 = vsub.f32 1.0, %v2223
        %v2225 = vmul.f32 %v2222, %v2224
        %v2226 = vadd.f32 %v2222, %v2225
        %vm2227 = vweird.f32 %v755
        %vm2228 = vweird.f32 %v2222
        %vm2229 = vmor %vm2227, %vm2228
        %v2230 = vsel %vm2229, %v2222, %v2226
        %v2231 = vand.u32 2147483647, %v755
        %vm2232 = vcmp.eq.f32.partialorder %v2231, 8.507059e+37
        %v2233 = vand.u32 %v755, 2147483648
        %v2234 = vor.u32 1.1754944e-38, %v2233
        %v2235 = vsel %vm2232, %v2234, %v2230
        %v2236 = vrcp.pop %v756
        %v2237 = vmul.f32 %v756, %v2236
        %v2238 = vsub.f32 1.0, %v2237
        %v2239 = vmul.f32 %v2236, %v2238
        %v2240 = vadd.f32 %v2236, %v2239
        %vm2241 = vweird.f32 %v756
        %vm2242 = vweird.f32 %v2236
        %vm2243 = vmor %vm2241, %vm2242
        %v2244 = vsel %vm2243, %v2236, %v2240
        %v2245 = vand.u32 2147483647, %v756
        %vm2246 = vcmp.eq.f32.partialorder %v2245, 8.507059e+37
        %v2247 = vand.u32 %v756, 2147483648
        %v2248 = vor.u32 1.1754944e-38, %v2247
        %v2249 = vsel %vm2246, %v2248, %v2244
        %v2250 = vrcp.pop %v757
        %v2251 = vmul.f32 %v757, %v2250
        %v2252 = vsub.f32 1.0, %v2251
        %v2253 = vmul.f32 %v2250, %v2252
        %v2254 = vadd.f32 %v2250, %v2253
        %vm2255 = vweird.f32 %v757
        %vm2256 = vweird.f32 %v2250
        %vm2257 = vmor %vm2255, %vm2256
        %v2258 = vsel %vm2257, %v2250, %v2254
        %v2259 = vand.u32 2147483647, %v757
        %vm2260 = vcmp.eq.f32.partialorder %v2259, 8.507059e+37
        %v2261 = vand.u32 %v757, 2147483648
        %v2262 = vor.u32 1.1754944e-38, %v2261
        %v2263 = vsel %vm2260, %v2262, %v2258
        %v2264 = vrcp.pop %v758
        %v2265 = vmul.f32 %v758, %v2264
        %v2266 = vsub.f32 1.0, %v2265
        %v2267 = vmul.f32 %v2264, %v2266
        %v2268 = vadd.f32 %v2264, %v2267
        %vm2269 = vweird.f32 %v758
        %vm2270 = vweird.f32 %v2264
        %vm2271 = vmor %vm2269, %vm2270
        %v2272 = vsel %vm2271, %v2264, %v2268
        %v2273 = vand.u32 2147483647, %v758
        %vm2274 = vcmp.eq.f32.partialorder %v2273, 8.507059e+37
        %v2275 = vand.u32 %v758, 2147483648
        %v2276 = vor.u32 1.1754944e-38, %v2275
        %v2277 = vsel %vm2274, %v2276, %v2272
        %v2278 = vrcp.pop %v759
        %v2279 = vmul.f32 %v759, %v2278
        %v2280 = vsub.f32 1.0, %v2279
        %v2281 = vmul.f32 %v2278, %v2280
        %v2282 = vadd.f32 %v2278, %v2281
        %vm2283 = vweird.f32 %v759
        %vm2284 = vweird.f32 %v2278
        %vm2285 = vmor %vm2283, %vm2284
        %v2286 = vsel %vm2285, %v2278, %v2282
        %v2287 = vand.u32 2147483647, %v759
        %vm2288 = vcmp.eq.f32.partialorder %v2287, 8.507059e+37
        %v2289 = vand.u32 %v759, 2147483648
        %v2290 = vor.u32 1.1754944e-38, %v2289
        %v2291 = vsel %vm2288, %v2290, %v2286
        %v2292 = vrcp.pop %v760
        %v2293 = vmul.f32 %v760, %v2292
        %v2294 = vsub.f32 1.0, %v2293
        %v2295 = vmul.f32 %v2292, %v2294
        %v2296 = vadd.f32 %v2292, %v2295
        %vm2297 = vweird.f32 %v760
        %vm2298 = vweird.f32 %v2292
        %vm2299 = vmor %vm2297, %vm2298
        %v2300 = vsel %vm2299, %v2292, %v2296
        %v2301 = vand.u32 2147483647, %v760
        %vm2302 = vcmp.eq.f32.partialorder %v2301, 8.507059e+37
        %v2303 = vand.u32 %v760, 2147483648
        %v2304 = vor.u32 1.1754944e-38, %v2303
        %v2305 = vsel %vm2302, %v2304, %v2300
        %v2306 = vrcp.pop %v761
        %v2307 = vmul.f32 %v761, %v2306
        %v2308 = vsub.f32 1.0, %v2307
        %v2309 = vmul.f32 %v2306, %v2308
        %v2310 = vadd.f32 %v2306, %v2309
        %vm2311 = vweird.f32 %v761
        %vm2312 = vweird.f32 %v2306
        %vm2313 = vmor %vm2311, %vm2312
        %v2314 = vsel %vm2313, %v2306, %v2310
        %v2315 = vand.u32 2147483647, %v761
        %vm2316 = vcmp.eq.f32.partialorder %v2315, 8.507059e+37
        %v2317 = vand.u32 %v761, 2147483648
        %v2318 = vor.u32 1.1754944e-38, %v2317
        %v2319 = vsel %vm2316, %v2318, %v2314
        %v2320 = vrcp.pop %v762
        %v2321 = vmul.f32 %v762, %v2320
        %v2322 = vsub.f32 1.0, %v2321
        %v2323 = vmul.f32 %v2320, %v2322
        %v2324 = vadd.f32 %v2320, %v2323
        %vm2325 = vweird.f32 %v762
        %vm2326 = vweird.f32 %v2320
        %vm2327 = vmor %vm2325, %vm2326
        %v2328 = vsel %vm2327, %v2320, %v2324
        %v2329 = vand.u32 2147483647, %v762
        %vm2330 = vcmp.eq.f32.partialorder %v2329, 8.507059e+37
        %v2331 = vand.u32 %v762, 2147483648
        %v2332 = vor.u32 1.1754944e-38, %v2331
        %v2333 = vsel %vm2330, %v2332, %v2328
        %v2334 = vrcp.pop %v763
        %v2335 = vmul.f32 %v763, %v2334
        %v2336 = vsub.f32 1.0, %v2335
        %v2337 = vmul.f32 %v2334, %v2336
        %v2338 = vadd.f32 %v2334, %v2337
        %vm2339 = vweird.f32 %v763
        %vm2340 = vweird.f32 %v2334
        %vm2341 = vmor %vm2339, %vm2340
        %v2342 = vsel %vm2341, %v2334, %v2338
        %v2343 = vand.u32 2147483647, %v763
        %vm2344 = vcmp.eq.f32.partialorder %v2343, 8.507059e+37
        %v2345 = vand.u32 %v763, 2147483648
        %v2346 = vor.u32 1.1754944e-38, %v2345
        %v2347 = vsel %vm2344, %v2346, %v2342
        %v2348 = vrcp.pop %v764
        %v2349 = vmul.f32 %v764, %v2348
        %v2350 = vsub.f32 1.0, %v2349
        %v2351 = vmul.f32 %v2348, %v2350
        %v2352 = vadd.f32 %v2348, %v2351
        %vm2353 = vweird.f32 %v764
        %vm2354 = vweird.f32 %v2348
        %vm2355 = vmor %vm2353, %vm2354
        %v2356 = vsel %vm2355, %v2348, %v2352
        %v2357 = vand.u32 2147483647, %v764
        %vm2358 = vcmp.eq.f32.partialorder %v2357, 8.507059e+37
        %v2359 = vand.u32 %v764, 2147483648
        %v2360 = vor.u32 1.1754944e-38, %v2359
        %v2361 = vsel %vm2358, %v2360, %v2356
        %v2362 = vrcp.pop %v765
        %v2363 = vmul.f32 %v765, %v2362
        %v2364 = vsub.f32 1.0, %v2363
        %v2365 = vmul.f32 %v2362, %v2364
        %v2366 = vadd.f32 %v2362, %v2365
        %vm2367 = vweird.f32 %v765
        %vm2368 = vweird.f32 %v2362
        %vm2369 = vmor %vm2367, %vm2368
        %v2370 = vsel %vm2369, %v2362, %v2366
        %v2371 = vand.u32 2147483647, %v765
        %vm2372 = vcmp.eq.f32.partialorder %v2371, 8.507059e+37
        %v2373 = vand.u32 %v765, 2147483648
        %v2374 = vor.u32 1.1754944e-38, %v2373
        %v2375 = vsel %vm2372, %v2374, %v2370
        %v2376 = vrcp.pop %v766
        %v2377 = vmul.f32 %v766, %v2376
        %v2378 = vsub.f32 1.0, %v2377
        %v2379 = vmul.f32 %v2376, %v2378
        %v2380 = vadd.f32 %v2376, %v2379
        %vm2381 = vweird.f32 %v766
        %vm2382 = vweird.f32 %v2376
        %vm2383 = vmor %vm2381, %vm2382
        %v2384 = vsel %vm2383, %v2376, %v2380
        %v2385 = vand.u32 2147483647, %v766
        %vm2386 = vcmp.eq.f32.partialorder %v2385, 8.507059e+37
        %v2387 = vand.u32 %v766, 2147483648
        %v2388 = vor.u32 1.1754944e-38, %v2387
        %v2389 = vsel %vm2386, %v2388, %v2384
        %v2390 = vrcp.pop %v767
        %v2391 = vmul.f32 %v767, %v2390
        %v2392 = vsub.f32 1.0, %v2391
        %v2393 = vmul.f32 %v2390, %v2392
        %v2394 = vadd.f32 %v2390, %v2393
        %vm2395 = vweird.f32 %v767
        %vm2396 = vweird.f32 %v2390
        %vm2397 = vmor %vm2395, %vm2396
        %v2398 = vsel %vm2397, %v2390, %v2394
        %v2399 = vand.u32 2147483647, %v767
        %vm2400 = vcmp.eq.f32.partialorder %v2399, 8.507059e+37
        %v2401 = vand.u32 %v767, 2147483648
        %v2402 = vor.u32 1.1754944e-38, %v2401
        %v2403 = vsel %vm2400, %v2402, %v2398
        %v2404 = vrcp.pop %v768
        %v2405 = vmul.f32 %v768, %v2404
        %v2406 = vsub.f32 1.0, %v2405
        %v2407 = vmul.f32 %v2404, %v2406
        %v2408 = vadd.f32 %v2404, %v2407
        %vm2409 = vweird.f32 %v768
        %vm2410 = vweird.f32 %v2404
        %vm2411 = vmor %vm2409, %vm2410
        %v2412 = vsel %vm2411, %v2404, %v2408
        %v2413 = vand.u32 2147483647, %v768
        %vm2414 = vcmp.eq.f32.partialorder %v2413, 8.507059e+37
        %v2415 = vand.u32 %v768, 2147483648
        %v2416 = vor.u32 1.1754944e-38, %v2415
        %v2417 = vsel %vm2414, %v2416, %v2412
        %v2418 = vrcp.pop %v769
        %v2419 = vmul.f32 %v769, %v2418
        %v2420 = vsub.f32 1.0, %v2419
        %v2421 = vmul.f32 %v2418, %v2420
        %v2422 = vadd.f32 %v2418, %v2421
        %vm2423 = vweird.f32 %v769
        %vm2424 = vweird.f32 %v2418
        %vm2425 = vmor %vm2423, %vm2424
        %v2426 = vsel %vm2425, %v2418, %v2422
        %v2427 = vand.u32 2147483647, %v769
        %vm2428 = vcmp.eq.f32.partialorder %v2427, 8.507059e+37
        %v2429 = vand.u32 %v769, 2147483648
        %v2430 = vor.u32 1.1754944e-38, %v2429
        %v2431 = vsel %vm2428, %v2430, %v2426
        %v2432 = vrcp.pop %v770
        %v2433 = vmul.f32 %v770, %v2432
        %v2434 = vsub.f32 1.0, %v2433
        %v2435 = vmul.f32 %v2432, %v2434
        %v2436 = vadd.f32 %v2432, %v2435
        %vm2437 = vweird.f32 %v770
        %vm2438 = vweird.f32 %v2432
        %vm2439 = vmor %vm2437, %vm2438
        %v2440 = vsel %vm2439, %v2432, %v2436
        %v2441 = vand.u32 2147483647, %v770
        %vm2442 = vcmp.eq.f32.partialorder %v2441, 8.507059e+37
        %v2443 = vand.u32 %v770, 2147483648
        %v2444 = vor.u32 1.1754944e-38, %v2443
        %v2445 = vsel %vm2442, %v2444, %v2440
        %v2446 = vrcp.pop %v771
        %v2447 = vmul.f32 %v771, %v2446
        %v2448 = vsub.f32 1.0, %v2447
        %v2449 = vmul.f32 %v2446, %v2448
        %v2450 = vadd.f32 %v2446, %v2449
        %vm2451 = vweird.f32 %v771
        %vm2452 = vweird.f32 %v2446
        %vm2453 = vmor %vm2451, %vm2452
        %v2454 = vsel %vm2453, %v2446, %v2450
        %v2455 = vand.u32 2147483647, %v771
        %vm2456 = vcmp.eq.f32.partialorder %v2455, 8.507059e+37
        %v2457 = vand.u32 %v771, 2147483648
        %v2458 = vor.u32 1.1754944e-38, %v2457
        %v2459 = vsel %vm2456, %v2458, %v2454
        %v2460 = vrcp.pop %v772
        %v2461 = vmul.f32 %v772, %v2460
        %v2462 = vsub.f32 1.0, %v2461
        %v2463 = vmul.f32 %v2460, %v2462
        %v2464 = vadd.f32 %v2460, %v2463
        %vm2465 = vweird.f32 %v772
        %vm2466 = vweird.f32 %v2460
        %vm2467 = vmor %vm2465, %vm2466
        %v2468 = vsel %vm2467, %v2460, %v2464
        %v2469 = vand.u32 2147483647, %v772
        %vm2470 = vcmp.eq.f32.partialorder %v2469, 8.507059e+37
        %v2471 = vand.u32 %v772, 2147483648
        %v2472 = vor.u32 1.1754944e-38, %v2471
        %v2473 = vsel %vm2470, %v2472, %v2468
        %v2474 = vrcp.pop %v773
        %v2475 = vmul.f32 %v773, %v2474
        %v2476 = vsub.f32 1.0, %v2475
        %v2477 = vmul.f32 %v2474, %v2476
        %v2478 = vadd.f32 %v2474, %v2477
        %vm2479 = vweird.f32 %v773
        %vm2480 = vweird.f32 %v2474
        %vm2481 = vmor %vm2479, %vm2480
        %v2482 = vsel %vm2481, %v2474, %v2478
        %v2483 = vand.u32 2147483647, %v773
        %vm2484 = vcmp.eq.f32.partialorder %v2483, 8.507059e+37
        %v2485 = vand.u32 %v773, 2147483648
        %v2486 = vor.u32 1.1754944e-38, %v2485
        %v2487 = vsel %vm2484, %v2486, %v2482
        %v2488 = vrcp.pop %v774
        %v2489 = vmul.f32 %v774, %v2488
        %v2490 = vsub.f32 1.0, %v2489
        %v2491 = vmul.f32 %v2488, %v2490
        %v2492 = vadd.f32 %v2488, %v2491
        %vm2493 = vweird.f32 %v774
        %vm2494 = vweird.f32 %v2488
        %vm2495 = vmor %vm2493, %vm2494
        %v2496 = vsel %vm2495, %v2488, %v2492
        %v2497 = vand.u32 2147483647, %v774
        %vm2498 = vcmp.eq.f32.partialorder %v2497, 8.507059e+37
        %v2499 = vand.u32 %v774, 2147483648
        %v2500 = vor.u32 1.1754944e-38, %v2499
        %v2501 = vsel %vm2498, %v2500, %v2496
        %v2502 = vrcp.pop %v775
        %v2503 = vmul.f32 %v775, %v2502
        %v2504 = vsub.f32 1.0, %v2503
        %v2505 = vmul.f32 %v2502, %v2504
        %v2506 = vadd.f32 %v2502, %v2505
        %vm2507 = vweird.f32 %v775
        %vm2508 = vweird.f32 %v2502
        %vm2509 = vmor %vm2507, %vm2508
        %v2510 = vsel %vm2509, %v2502, %v2506
        %v2511 = vand.u32 2147483647, %v775
        %vm2512 = vcmp.eq.f32.partialorder %v2511, 8.507059e+37
        %v2513 = vand.u32 %v775, 2147483648
        %v2514 = vor.u32 1.1754944e-38, %v2513
        %v2515 = vsel %vm2512, %v2514, %v2510
        %v2516 = vrcp.pop %v776
        %v2517 = vmul.f32 %v776, %v2516
        %v2518 = vsub.f32 1.0, %v2517
        %v2519 = vmul.f32 %v2516, %v2518
        %v2520 = vadd.f32 %v2516, %v2519
        %vm2521 = vweird.f32 %v776
        %vm2522 = vweird.f32 %v2516
        %vm2523 = vmor %vm2521, %vm2522
        %v2524 = vsel %vm2523, %v2516, %v2520
        %v2525 = vand.u32 2147483647, %v776
        %vm2526 = vcmp.eq.f32.partialorder %v2525, 8.507059e+37
        %v2527 = vand.u32 %v776, 2147483648
        %v2528 = vor.u32 1.1754944e-38, %v2527
        %v2529 = vsel %vm2526, %v2528, %v2524
        %v2530 = vrcp.pop %v777
        %v2531 = vmul.f32 %v777, %v2530
        %v2532 = vsub.f32 1.0, %v2531
        %v2533 = vmul.f32 %v2530, %v2532
        %v2534 = vadd.f32 %v2530, %v2533
        %vm2535 = vweird.f32 %v777
        %vm2536 = vweird.f32 %v2530
        %vm2537 = vmor %vm2535, %vm2536
        %v2538 = vsel %vm2537, %v2530, %v2534
        %v2539 = vand.u32 2147483647, %v777
        %vm2540 = vcmp.eq.f32.partialorder %v2539, 8.507059e+37
        %v2541 = vand.u32 %v777, 2147483648
        %v2542 = vor.u32 1.1754944e-38, %v2541
        %v2543 = vsel %vm2540, %v2542, %v2538
        %v2544 = vrcp.pop %v778
        %v2545 = vmul.f32 %v778, %v2544
        %v2546 = vsub.f32 1.0, %v2545
        %v2547 = vmul.f32 %v2544, %v2546
        %v2548 = vadd.f32 %v2544, %v2547
        %vm2549 = vweird.f32 %v778
        %vm2550 = vweird.f32 %v2544
        %vm2551 = vmor %vm2549, %vm2550
        %v2552 = vsel %vm2551, %v2544, %v2548
        %v2553 = vand.u32 2147483647, %v778
        %vm2554 = vcmp.eq.f32.partialorder %v2553, 8.507059e+37
        %v2555 = vand.u32 %v778, 2147483648
        %v2556 = vor.u32 1.1754944e-38, %v2555
        %v2557 = vsel %vm2554, %v2556, %v2552
        %v2558 = vrcp.pop %v779
        %v2559 = vmul.f32 %v779, %v2558
        %v2560 = vsub.f32 1.0, %v2559
        %v2561 = vmul.f32 %v2558, %v2560
        %v2562 = vadd.f32 %v2558, %v2561
        %vm2563 = vweird.f32 %v779
        %vm2564 = vweird.f32 %v2558
        %vm2565 = vmor %vm2563, %vm2564
        %v2566 = vsel %vm2565, %v2558, %v2562
        %v2567 = vand.u32 2147483647, %v779
        %vm2568 = vcmp.eq.f32.partialorder %v2567, 8.507059e+37
        %v2569 = vand.u32 %v779, 2147483648
        %v2570 = vor.u32 1.1754944e-38, %v2569
        %v2571 = vsel %vm2568, %v2570, %v2566
        %v2572 = vmul.f32 %v140, %v793
        %v2573 = vmul.f32 %v141, %v807
        %v2574 = vmul.f32 %v142, %v821
        %v2575 = vmul.f32 %v143, %v835
        %v2576 = vmul.f32 %v144, %v849
        %v2577 = vmul.f32 %v145, %v863
        %v2578 = vmul.f32 %v146, %v877
        %v2579 = vmul.f32 %v147, %v891
        %v2580 = vmul.f32 %v148, %v905
        %v2581 = vmul.f32 %v149, %v919
        %v2582 = vmul.f32 %v150, %v933
        %v2583 = vmul.f32 %v151, %v947
        %v2584 = vmul.f32 %v152, %v961
        %v2585 = vmul.f32 %v153, %v975
        %v2586 = vmul.f32 %v154, %v989
        %v2587 = vmul.f32 %v155, %v1003
        %v2588 = vmul.f32 %v156, %v1017
        %v2589 = vmul.f32 %v157, %v1031
        %v2590 = vmul.f32 %v158, %v1045
        %v2591 = vmul.f32 %v159, %v1059
        %v2592 = vmul.f32 %v160, %v1073
        %v2593 = vmul.f32 %v161, %v1087
        %v2594 = vmul.f32 %v162, %v1101
        %v2595 = vmul.f32 %v163, %v1115
        %v2596 = vmul.f32 %v164, %v1129
        %v2597 = vmul.f32 %v165, %v1143
        %v2598 = vmul.f32 %v166, %v1157
        %v2599 = vmul.f32 %v167, %v1171
        %v2600 = vmul.f32 %v168, %v1185
        %v2601 = vmul.f32 %v169, %v1199
        %v2602 = vmul.f32 %v170, %v1213
        %v2603 = vmul.f32 %v171, %v1227
        %v2604 = vmul.f32 %v172, %v1241
        %v2605 = vmul.f32 %v173, %v1255
        %v2606 = vmul.f32 %v174, %v1269
        %v2607 = vmul.f32 %v175, %v1283
        %v2608 = vmul.f32 %v176, %v1297
        %v2609 = vmul.f32 %v177, %v1311
        %v2610 = vmul.f32 %v178, %v1325
        %v2611 = vmul.f32 %v179, %v1339
        %v2612 = vmul.f32 %v180, %v1353
        %v2613 = vmul.f32 %v181, %v1367
        %v2614 = vmul.f32 %v182, %v1381
        %v2615 = vmul.f32 %v183, %v1395
        %v2616 = vmul.f32 %v184, %v1409
        %v2617 = vmul.f32 %v185, %v1423
        %v2618 = vmul.f32 %v186, %v1437
        %v2619 = vmul.f32 %v187, %v1451
        %v2620 = vmul.f32 %v188, %v1465
        %v2621 = vmul.f32 %v189, %v1479
        %v2622 = vmul.f32 %v190, %v1493
        %v2623 = vmul.f32 %v191, %v1507
        %v2624 = vmul.f32 %v192, %v1521
        %v2625 = vmul.f32 %v193, %v1535
        %v2626 = vmul.f32 %v194, %v1549
        %v2627 = vmul.f32 %v195, %v1563
        %v2628 = vmul.f32 %v196, %v1577
        %v2629 = vmul.f32 %v197, %v1591
        %v2630 = vmul.f32 %v198, %v1605
        %v2631 = vmul.f32 %v199, %v1619
        %v2632 = vmul.f32 %v200, %v1633
        %v2633 = vmul.f32 %v201, %v1647
        %v2634 = vmul.f32 %v202, %v1661
        %v2635 = vmul.f32 %v203, %v1675
        %v2636 = vmul.f32 %v204, %v1689
        %v2637 = vmul.f32 %v205, %v1703
        %v2638 = vmul.f32 %v206, %v1717
        %v2639 = vmul.f32 %v207, %v1731
        %v2640 = vmul.f32 %v208, %v1745
        %v2641 = vmul.f32 %v209, %v1759
        %v2642 = vmul.f32 %v210, %v1773
        %v2643 = vmul.f32 %v211, %v1787
        %v2644 = vmul.f32 %v212, %v1801
        %v2645 = vmul.f32 %v213, %v1815
        %v2646 = vmul.f32 %v214, %v1829
        %v2647 = vmul.f32 %v215, %v1843
        %v2648 = vmul.f32 %v216, %v1857
        %v2649 = vmul.f32 %v217, %v1871
        %v2650 = vmul.f32 %v218, %v1885
        %v2651 = vmul.f32 %v219, %v1899
        %v2652 = vmul.f32 %v220, %v1913
        %v2653 = vmul.f32 %v221, %v1927
        %v2654 = vmul.f32 %v222, %v1941
        %v2655 = vmul.f32 %v223, %v1955
        %v2656 = vmul.f32 %v224, %v1969
        %v2657 = vmul.f32 %v225, %v1983
        %v2658 = vmul.f32 %v226, %v1997
        %v2659 = vmul.f32 %v227, %v2011
        %v2660 = vmul.f32 %v228, %v2025
        %v2661 = vmul.f32 %v229, %v2039
        %v2662 = vmul.f32 %v230, %v2053
        %v2663 = vmul.f32 %v231, %v2067
        %v2664 = vmul.f32 %v232, %v2081
        %v2665 = vmul.f32 %v233, %v2095
        %v2666 = vmul.f32 %v234, %v2109
        %v2667 = vmul.f32 %v235, %v2123
        %v2668 = vmul.f32 %v236, %v2137
        %v2669 = vmul.f32 %v237, %v2151
        %v2670 = vmul.f32 %v238, %v2165
        %v2671 = vmul.f32 %v239, %v2179
        %v2672 = vmul.f32 %v240, %v2193
        %v2673 = vmul.f32 %v241, %v2207
        %v2674 = vmul.f32 %v242, %v2221
        %v2675 = vmul.f32 %v243, %v2235
        %v2676 = vmul.f32 %v244, %v2249
        %v2677 = vmul.f32 %v245, %v2263
        %v2678 = vmul.f32 %v246, %v2277
        %v2679 = vmul.f32 %v247, %v2291
        %v2680 = vmul.f32 %v248, %v2305
        %v2681 = vmul.f32 %v249, %v2319
        %v2682 = vmul.f32 %v250, %v2333
        %v2683 = vmul.f32 %v251, %v2347
        %v2684 = vmul.f32 %v252, %v2361
        %v2685 = vmul.f32 %v253, %v2375
        %v2686 = vmul.f32 %v254, %v2389
        %v2687 = vmul.f32 %v255, %v2403
        %v2688 = vmul.f32 %v256, %v2417
        %v2689 = vmul.f32 %v257, %v2431
        %v2690 = vmul.f32 %v258, %v2445
        %v2691 = vmul.f32 %v259, %v2459
        %v2692 = vmul.f32 %v260, %v2473
        %v2693 = vmul.f32 %v261, %v2487
        %v2694 = vmul.f32 %v262, %v2501
        %v2695 = vmul.f32 %v263, %v2515
        %v2696 = vmul.f32 %v264, %v2529
        %v2697 = vmul.f32 %v265, %v2543
        %v2698 = vmul.f32 %v266, %v2557
        %v2699 = vmul.f32 %v267, %v2571
        %2700 = vst [vmem:[%s137] sm:$0xff] %v2572
        %2701 = vst [vmem:[%s137 + $0x8] sm:$0xff] %v2573
        %2702 = vst [vmem:[%s137 + $0x10] sm:$0xff] %v2574
        %2703 = vst [vmem:[%s137 + $0x18] sm:$0xff] %v2575
        %2704 = vst [vmem:[%s137 + $0x20] sm:$0xff] %v2576
        %2705 = vst [vmem:[%s137 + $0x28] sm:$0xff] %v2577
        %2706 = vst [vmem:[%s137 + $0x30] sm:$0xff] %v2578
        %2707 = vst [vmem:[%s137 + $0x38] sm:$0xff] %v2579
        %2708 = vst [vmem:[%s137 + $0x40] sm:$0xff] %v2580
        %2709 = vst [vmem:[%s137 + $0x48] sm:$0xff] %v2581
        %2710 = vst [vmem:[%s137 + $0x50] sm:$0xff] %v2582
        %2711 = vst [vmem:[%s137 + $0x58] sm:$0xff] %v2583
        %2712 = vst [vmem:[%s137 + $0x60] sm:$0xff] %v2584
        %2713 = vst [vmem:[%s137 + $0x68] sm:$0xff] %v2585
        %2714 = vst [vmem:[%s137 + $0x70] sm:$0xff] %v2586
        %2715 = vst [vmem:[%s137 + $0x78] sm:$0xff] %v2587
        %2716 = vst [vmem:[%s137 + $0x80] sm:$0xff] %v2588
        %2717 = vst [vmem:[%s137 + $0x88] sm:$0xff] %v2589
        %2718 = vst [vmem:[%s137 + $0x90] sm:$0xff] %v2590
        %2719 = vst [vmem:[%s137 + $0x98] sm:$0xff] %v2591
        %2720 = vst [vmem:[%s137 + $0xa0] sm:$0xff] %v2592
        %2721 = vst [vmem:[%s137 + $0xa8] sm:$0xff] %v2593
        %2722 = vst [vmem:[%s137 + $0xb0] sm:$0xff] %v2594
        %2723 = vst [vmem:[%s137 + $0xb8] sm:$0xff] %v2595
        %2724 = vst [vmem:[%s137 + $0xc0] sm:$0xff] %v2596
        %2725 = vst [vmem:[%s137 + $0xc8] sm:$0xff] %v2597
        %2726 = vst [vmem:[%s137 + $0xd0] sm:$0xff] %v2598
        %2727 = vst [vmem:[%s137 + $0xd8] sm:$0xff] %v2599
        %2728 = vst [vmem:[%s137 + $0xe0] sm:$0xff] %v2600
        %2729 = vst [vmem:[%s137 + $0xe8] sm:$0xff] %v2601
        %2730 = vst [vmem:[%s137 + $0xf0] sm:$0xff] %v2602
        %2731 = vst [vmem:[%s137 + $0xf8] sm:$0xff] %v2603
        %2732 = vst [vmem:[%s137 + $0x100] sm:$0xff] %v2604
        %2733 = vst [vmem:[%s137 + $0x108] sm:$0xff] %v2605
        %2734 = vst [vmem:[%s137 + $0x110] sm:$0xff] %v2606
        %2735 = vst [vmem:[%s137 + $0x118] sm:$0xff] %v2607
        %2736 = vst [vmem:[%s137 + $0x120] sm:$0xff] %v2608
        %2737 = vst [vmem:[%s137 + $0x128] sm:$0xff] %v2609
        %2738 = vst [vmem:[%s137 + $0x130] sm:$0xff] %v2610
        %2739 = vst [vmem:[%s137 + $0x138] sm:$0xff] %v2611
        %2740 = vst [vmem:[%s137 + $0x140] sm:$0xff] %v2612
        %2741 = vst [vmem:[%s137 + $0x148] sm:$0xff] %v2613
        %2742 = vst [vmem:[%s137 + $0x150] sm:$0xff] %v2614
        %2743 = vst [vmem:[%s137 + $0x158] sm:$0xff] %v2615
        %2744 = vst [vmem:[%s137 + $0x160] sm:$0xff] %v2616
        %2745 = vst [vmem:[%s137 + $0x168] sm:$0xff] %v2617
        %2746 = vst [vmem:[%s137 + $0x170] sm:$0xff] %v2618
        %2747 = vst [vmem:[%s137 + $0x178] sm:$0xff] %v2619
        %2748 = vst [vmem:[%s137 + $0x180] sm:$0xff] %v2620
        %2749 = vst [vmem:[%s137 + $0x188] sm:$0xff] %v2621
        %2750 = vst [vmem:[%s137 + $0x190] sm:$0xff] %v2622
        %2751 = vst [vmem:[%s137 + $0x198] sm:$0xff] %v2623
        %2752 = vst [vmem:[%s137 + $0x1a0] sm:$0xff] %v2624
        %2753 = vst [vmem:[%s137 + $0x1a8] sm:$0xff] %v2625
        %2754 = vst [vmem:[%s137 + $0x1b0] sm:$0xff] %v2626
        %2755 = vst [vmem:[%s137 + $0x1b8] sm:$0xff] %v2627
        %2756 = vst [vmem:[%s137 + $0x1c0] sm:$0xff] %v2628
        %2757 = vst [vmem:[%s137 + $0x1c8] sm:$0xff] %v2629
        %2758 = vst [vmem:[%s137 + $0x1d0] sm:$0xff] %v2630
        %2759 = vst [vmem:[%s137 + $0x1d8] sm:$0xff] %v2631
        %2760 = vst [vmem:[%s137 + $0x1e0] sm:$0xff] %v2632
        %2761 = vst [vmem:[%s137 + $0x1e8] sm:$0xff] %v2633
        %2762 = vst [vmem:[%s137 + $0x1f0] sm:$0xff] %v2634
        %2763 = vst [vmem:[%s137 + $0x1f8] sm:$0xff] %v2635
        %2764 = vst [vmem:[%s137 + $0x200] sm:$0xff] %v2636
        %2765 = vst [vmem:[%s137 + $0x208] sm:$0xff] %v2637
        %2766 = vst [vmem:[%s137 + $0x210] sm:$0xff] %v2638
        %2767 = vst [vmem:[%s137 + $0x218] sm:$0xff] %v2639
        %2768 = vst [vmem:[%s137 + $0x220] sm:$0xff] %v2640
        %2769 = vst [vmem:[%s137 + $0x228] sm:$0xff] %v2641
        %2770 = vst [vmem:[%s137 + $0x230] sm:$0xff] %v2642
        %2771 = vst [vmem:[%s137 + $0x238] sm:$0xff] %v2643
        %2772 = vst [vmem:[%s137 + $0x240] sm:$0xff] %v2644
        %2773 = vst [vmem:[%s137 + $0x248] sm:$0xff] %v2645
        %2774 = vst [vmem:[%s137 + $0x250] sm:$0xff] %v2646
        %2775 = vst [vmem:[%s137 + $0x258] sm:$0xff] %v2647
        %2776 = vst [vmem:[%s137 + $0x260] sm:$0xff] %v2648
        %2777 = vst [vmem:[%s137 + $0x268] sm:$0xff] %v2649
        %2778 = vst [vmem:[%s137 + $0x270] sm:$0xff] %v2650
        %2779 = vst [vmem:[%s137 + $0x278] sm:$0xff] %v2651
        %2780 = vst [vmem:[%s137 + $0x280] sm:$0xff] %v2652
        %2781 = vst [vmem:[%s137 + $0x288] sm:$0xff] %v2653
        %2782 = vst [vmem:[%s137 + $0x290] sm:$0xff] %v2654
        %2783 = vst [vmem:[%s137 + $0x298] sm:$0xff] %v2655
        %2784 = vst [vmem:[%s137 + $0x2a0] sm:$0xff] %v2656
        %2785 = vst [vmem:[%s137 + $0x2a8] sm:$0xff] %v2657
        %2786 = vst [vmem:[%s137 + $0x2b0] sm:$0xff] %v2658
        %2787 = vst [vmem:[%s137 + $0x2b8] sm:$0xff] %v2659
        %2788 = vst [vmem:[%s137 + $0x2c0] sm:$0xff] %v2660
        %2789 = vst [vmem:[%s137 + $0x2c8] sm:$0xff] %v2661
        %2790 = vst [vmem:[%s137 + $0x2d0] sm:$0xff] %v2662
        %2791 = vst [vmem:[%s137 + $0x2d8] sm:$0xff] %v2663
        %2792 = vst [vmem:[%s137 + $0x2e0] sm:$0xff] %v2664
        %2793 = vst [vmem:[%s137 + $0x2e8] sm:$0xff] %v2665
        %2794 = vst [vmem:[%s137 + $0x2f0] sm:$0xff] %v2666
        %2795 = vst [vmem:[%s137 + $0x2f8] sm:$0xff] %v2667
        %2796 = vst [vmem:[%s137 + $0x300] sm:$0xff] %v2668
        %2797 = vst [vmem:[%s137 + $0x308] sm:$0xff] %v2669
        %2798 = vst [vmem:[%s137 + $0x310] sm:$0xff] %v2670
        %2799 = vst [vmem:[%s137 + $0x318] sm:$0xff] %v2671
        %2800 = vst [vmem:[%s137 + $0x320] sm:$0xff] %v2672
        %2801 = vst [vmem:[%s137 + $0x328] sm:$0xff] %v2673
        %2802 = vst [vmem:[%s137 + $0x330] sm:$0xff] %v2674
        %2803 = vst [vmem:[%s137 + $0x338] sm:$0xff] %v2675
        %2804 = vst [vmem:[%s137 + $0x340] sm:$0xff] %v2676
        %2805 = vst [vmem:[%s137 + $0x348] sm:$0xff] %v2677
        %2806 = vst [vmem:[%s137 + $0x350] sm:$0xff] %v2678
        %2807 = vst [vmem:[%s137 + $0x358] sm:$0xff] %v2679
        %2808 = vst [vmem:[%s137 + $0x360] sm:$0xff] %v2680
        %2809 = vst [vmem:[%s137 + $0x368] sm:$0xff] %v2681
        %2810 = vst [vmem:[%s137 + $0x370] sm:$0xff] %v2682
        %2811 = vst [vmem:[%s137 + $0x378] sm:$0xff] %v2683
        %2812 = vst [vmem:[%s137 + $0x380] sm:$0xff] %v2684
        %2813 = vst [vmem:[%s137 + $0x388] sm:$0xff] %v2685
        %2814 = vst [vmem:[%s137 + $0x390] sm:$0xff] %v2686
        %2815 = vst [vmem:[%s137 + $0x398] sm:$0xff] %v2687
        %2816 = vst [vmem:[%s137 + $0x3a0] sm:$0xff] %v2688
        %2817 = vst [vmem:[%s137 + $0x3a8] sm:$0xff] %v2689
        %2818 = vst [vmem:[%s137 + $0x3b0] sm:$0xff] %v2690
        %2819 = vst [vmem:[%s137 + $0x3b8] sm:$0xff] %v2691
        %2820 = vst [vmem:[%s137 + $0x3c0] sm:$0xff] %v2692
        %2821 = vst [vmem:[%s137 + $0x3c8] sm:$0xff] %v2693
        %2822 = vst [vmem:[%s137 + $0x3d0] sm:$0xff] %v2694
        %2823 = vst [vmem:[%s137 + $0x3d8] sm:$0xff] %v2695
        %2824 = vst [vmem:[%s137 + $0x3e0] sm:$0xff] %v2696
        %2825 = vst [vmem:[%s137 + $0x3e8] sm:$0xff] %v2697
        %2826 = vst [vmem:[%s137 + $0x3f0] sm:$0xff] %v2698
        %2827 = vst [vmem:[%s137 + $0x3f8] sm:$0xff] %v2699
        %s2828 = sand.u32 %s52, 1
        %s2829 = scalar_lea.sflag [#allocation4], %s2828
        %s2830 = sand.u32 %s52, 1
        %s2831 = smul.addr %s2830, 1024
        %s2832 = scalar_lea.vmem [#allocation5], %s2831
        // Predicated region
        $region29: #{tpu_custom_call.1} parent=23 // pred_check
          %p2833 = pneg %p62
        $region30: #{tpu_custom_call.1} parent=23 // pred_check_branch
          %2835 = sbr.rel (%p2833) target = $region32
        $region31: #{tpu_custom_call.1} parent=23 // pred_region
          %s2836 = smul.u32 8, %s18
          %2838 = vsyncadd %s2829, 0
          %s2839 = smul.addr %s2836, 16
          %s2840 = smul.addr %s2839, 8
          %s2841 = scalar_lea.hbm %s1, %s2840
          %s2842 = sshll.u32 %s2832, 4
          %s2843 = int_to_ptr.vmem [resolvable:$true] %s2842
          %s2844 = sshll.u32 %s2841, 4
          %s2845 = int_to_ptr.hbm [resolvable:$true] %s2844
          %2850 = dma.vmem_to_hbm [thread:$0]  %s2843, 16384, %s2845, %s2829, 2048, 2048, 128
        $region32: #{tpu_custom_call.1} parent=23 // pred_fallthru
          _
      $region24: #{tpu_custom_call.1} parent=5 // pred_fallthru
        _
      %p2851 = scmp.le.s32.totalorder 2, %s13
      // Predicated region
      $region33: #{tpu_custom_call.1} parent=5 // pred_check
        %p2852 = pneg %p2851
      $region34: #{tpu_custom_call.1} parent=5 // pred_check_branch
        %2854 = sbr.rel (%p2852) target = $region36
      $region35: #{tpu_custom_call.1} parent=5 // pred_region
        %s2855 = ssub.s32 %s13, 2
        // Predicated region
        $region37: #{tpu_custom_call.1} parent=35 // pred_check
          %p2856 = pneg %p68
        $region38: #{tpu_custom_call.1} parent=35 // pred_check_branch
          %2858 = sbr.rel (%p2856) target = $region40
        $region39: #{tpu_custom_call.1} parent=35 // pred_region
          %s2859 = sand.u32 %s53, 1
          %s2860 = scalar_lea.sflag [#allocation4], %s2859
          %s2861 = sand.u32 %s53, 1
          %s2862 = smul.addr %s2861, 1024
          %s2863 = scalar_lea.vmem [#allocation5], %s2862
          %2865 = dma.done %s2860, 16384
        $region40: #{tpu_custom_call.1} parent=35 // pred_fallthru
          _
      $region36: #{tpu_custom_call.1} parent=5 // pred_fallthru
        _
    $region6: #{tpu_custom_call.1} parent=1 // loop_footer
      %s17 = sadd.s32 1, %s13
    $region7: #{tpu_custom_call.1} parent=1 // loop_footer_branch
      %12 = sbr.rel target = $region3
    $region8: #{tpu_custom_call.1} parent=1 // loop_exit
      _
    %2866 = vsyncpa [#allocation3], 1
    %s2867 = scalar_lea.sflag [#allocation3], 1
    %2868 = vsyncpa %s2867, 1
    %2869 = vsyncpa [#allocation4], 1
    %s2870 = scalar_lea.sflag [#allocation4], 1
    %2871 = vsyncpa %s2870, 1

</llo_original>
